<compile_context>
chip_gen: v7x
topology: tpu7x:2x2x1
jax: 0.10.0
libtpu: 0.0.40
codegen_flags: <defaults>
</compile_context>

<pallas_src>
import math

import jax
import jax.numpy as jnp
from jax.experimental import pallas as pl
from jax.experimental.pallas import tpu as pltpu


# --------------------------------------------------------------------------
# Pallas kernel: fused Linear -> ReLU -> Linear -> ReLU on one (tm, D) tile.
# --------------------------------------------------------------------------
def _ffn_kernel(x_ref, w1_ref, b1_ref, w2_ref, b2_ref, o_ref):
    # x tile: (tm, Dp) f32 ; w1: (Dp, Fp) bf16 ; b1: (1, Fp) f32
    # w2: (Fp, Dp) bf16 ; b2: (1, Dp) f32 ; out tile: (tm, Dp) f32
    x = x_ref[...].astype(jnp.bfloat16)
    h = jnp.dot(x, w1_ref[...], preferred_element_type=jnp.float32) + b1_ref[...]
    h = jnp.maximum(h, 0.0)                                   # ReLU (f32)
    y = jnp.dot(h.astype(jnp.bfloat16), w2_ref[...],
                preferred_element_type=jnp.float32) + b2_ref[...]
    o_ref[...] = jnp.maximum(y, 0.0)                          # second ReLU (faithful to module)


# --------------------------------------------------------------------------
# Wrapper
# --------------------------------------------------------------------------
def _round_up(x, m):
    return ((x + m - 1) // m) * m


def feedforward(x, w1, b1, w2, b2, *, block_m=256):
    """Pallas-fused Feedforward. x: (..., hidden). Returns same shape as x."""
    orig_shape = x.shape
    hidden = orig_shape[-1]
    filt = w1.shape[1]
    M = int(math.prod(orig_shape[:-1]))

    # Pad channel dims to lane-dense multiples of 128, M tile to multiple of 8.
    Dp = _round_up(hidden, 128)
    Fp = _round_up(filt, 128)
    tm = min(block_m, _round_up(M, 8))
    Mp = _round_up(M, tm)

    x2 = jnp.pad(x.reshape(M, hidden).astype(jnp.float32),
                 ((0, Mp - M), (0, Dp - hidden)))
    # Weights in bf16 (halves DMA bytes, native MXU dtype); biases stay f32.
    w1p = jnp.pad(w1, ((0, Dp - hidden), (0, Fp - filt))).astype(jnp.bfloat16)
    b1p = jnp.pad(b1.reshape(1, -1).astype(jnp.float32), ((0, 0), (0, Fp - filt)))
    w2p = jnp.pad(w2, ((0, Fp - filt), (0, Dp - hidden))).astype(jnp.bfloat16)
    b2p = jnp.pad(b2.reshape(1, -1).astype(jnp.float32), ((0, 0), (0, Dp - hidden)))

    out = pl.pallas_call(
        _ffn_kernel,
        out_shape=jax.ShapeDtypeStruct((Mp, Dp), jnp.float32),
        grid=(Mp // tm,),
        in_specs=[
            pl.BlockSpec((tm, Dp), lambda i: (i, 0)),   # x rows, tiled over grid
            pl.BlockSpec((Dp, Fp), lambda i: (0, 0)),   # W1 (full)
            pl.BlockSpec((1, Fp), lambda i: (0, 0)),    # b1
            pl.BlockSpec((Fp, Dp), lambda i: (0, 0)),   # W2 (full)
            pl.BlockSpec((1, Dp), lambda i: (0, 0)),    # b2
        ],
        out_specs=pl.BlockSpec((tm, Dp), lambda i: (i, 0)),
        compiler_params=pltpu.CompilerParams(
            dimension_semantics=("parallel",),
        ),
    )(x2, w1p, b1p, w2p, b2p)

    return out[:M, :hidden].reshape(orig_shape)


# --------------------------------------------------------------------------
# Pure-JAX reference (f32)
# --------------------------------------------------------------------------
def _ref_feedforward(x, w1, b1, w2, b2):
    h = jnp.maximum(x @ w1 + b1, 0.0)
    return jnp.maximum(h @ w2 + b2, 0.0)


# --------------------------------------------------------------------------
if __name__ == "__main__":
    batch, seq = 2, 16
    hidden_dim, filter_size = 256, 1024   # small, lane-aligned stand-ins for 512/2048

    key = jax.random.PRNGKey(0)
    kx, k1, k2, k3, k4 = jax.random.split(key, 5)

    x = jax.random.normal(kx, (batch, seq, hidden_dim), jnp.float32)
    s = 0.05
    w1 = s * jax.random.normal(k1, (hidden_dim, filter_size), jnp.float32)
    b1 = s * jax.random.normal(k2, (filter_size,), jnp.float32)
    w2 = s * jax.random.normal(k3, (filter_size, hidden_dim), jnp.float32)
    b2 = s * jax.random.normal(k4, (hidden_dim,), jnp.float32)

    out = feedforward(x, w1, b1, w2, b2)
    out = jax.block_until_ready(out)

    ref = _ref_feedforward(x, w1, b1, w2, b2)
    assert out.shape == x.shape
    # Loose tolerance: kernel matmuls run in bf16 (f32 accumulation), reference is f32.
    assert jnp.allclose(out, ref, atol=5e-2, rtol=5e-2), "mismatch vs pure-JAX reference"

    print("KERNEL_OK")
</pallas_src>

<mosaic_0001>
module attributes {stable_mosaic.version = 11 : i64} {
  func.func @_ffn_kernel(%arg0: i32, %arg1: memref<32x256xf32, #tpu.memory_space<vmem>>, %arg2: memref<256x1024xbf16, #tpu.memory_space<vmem>>, %arg3: memref<1x1024xf32, #tpu.memory_space<vmem>>, %arg4: memref<1024x256xbf16, #tpu.memory_space<vmem>>, %arg5: memref<1x256xf32, #tpu.memory_space<vmem>>, %arg6: memref<32x256xf32, #tpu.memory_space<vmem>>) attributes {dimension_semantics = [#tpu.dimension_semantics<parallel>], iteration_bounds = array<i64: 1>, scalar_prefetch = 0 : i64, scratch_operands = 0 : i64, tpu.core_type = #tpu.core_type<tc>, window_params = [{transform_indices = @transform_0, window_bounds = array<i64: 32, 256>}, {pipeline_mode = #tpu.pipeline_mode<synchronous>, transform_indices = @transform_1, window_bounds = array<i64: 256, 1024>}, {pipeline_mode = #tpu.pipeline_mode<synchronous>, transform_indices = @transform_2, window_bounds = array<i64: 1, 1024>}, {pipeline_mode = #tpu.pipeline_mode<synchronous>, transform_indices = @transform_3, window_bounds = array<i64: 1024, 256>}, {pipeline_mode = #tpu.pipeline_mode<synchronous>, transform_indices = @transform_4, window_bounds = array<i64: 1, 256>}, {transform_indices = @transform_5, window_bounds = array<i64: 32, 256>}]} {
    %c0 = arith.constant 0 : index
    %c0_0 = arith.constant 0 : index
    %0 = vector.load %arg1[%c0, %c0_0] : memref<32x256xf32, #tpu.memory_space<vmem>>, vector<32x256xf32>
    %1 = arith.truncf %0 : vector<32x256xf32> to vector<32x256xbf16>
    %c0_1 = arith.constant 0 : index
    %c0_2 = arith.constant 0 : index
    %2 = vector.load %arg2[%c0_1, %c0_2] : memref<256x1024xbf16, #tpu.memory_space<vmem>>, vector<256x1024xbf16>
    %cst = arith.constant dense<0.000000e+00> : vector<32x1024xf32>
    %3 = tpu.matmul %1, %2, %cst {dimension_numbers = #tpu.dot_dimension_numbers<[1], [0], [0], [1], [0, 0, 1, 1], [], []>} : vector<32x256xbf16>, vector<256x1024xbf16>, vector<32x1024xf32> -> vector<32x1024xf32>
    %c0_3 = arith.constant 0 : index
    %c0_4 = arith.constant 0 : index
    %4 = vector.load %arg3[%c0_3, %c0_4] : memref<1x1024xf32, #tpu.memory_space<vmem>>, vector<1x1024xf32>
    %5 = vector.broadcast %4 : vector<1x1024xf32> to vector<32x1024xf32>
    %6 = arith.addf %3, %5 : vector<32x1024xf32>
    %cst_5 = arith.constant 0.000000e+00 : f32
    %7 = vector.broadcast %cst_5 : f32 to vector<32x1024xf32>
    %8 = arith.maximumf %6, %7 : vector<32x1024xf32>
    %9 = arith.truncf %8 : vector<32x1024xf32> to vector<32x1024xbf16>
    %c0_6 = arith.constant 0 : index
    %c0_7 = arith.constant 0 : index
    %10 = vector.load %arg4[%c0_6, %c0_7] : memref<1024x256xbf16, #tpu.memory_space<vmem>>, vector<1024x256xbf16>
    %cst_8 = arith.constant dense<0.000000e+00> : vector<32x256xf32>
    %11 = tpu.matmul %9, %10, %cst_8 {dimension_numbers = #tpu.dot_dimension_numbers<[1], [0], [0], [1], [0, 0, 1, 1], [], []>} : vector<32x1024xbf16>, vector<1024x256xbf16>, vector<32x256xf32> -> vector<32x256xf32>
    %c0_9 = arith.constant 0 : index
    %c0_10 = arith.constant 0 : index
    %12 = vector.load %arg5[%c0_9, %c0_10] : memref<1x256xf32, #tpu.memory_space<vmem>>, vector<1x256xf32>
    %13 = vector.broadcast %12 : vector<1x256xf32> to vector<32x256xf32>
    %14 = arith.addf %11, %13 : vector<32x256xf32>
    %cst_11 = arith.constant 0.000000e+00 : f32
    %15 = vector.broadcast %cst_11 : f32 to vector<32x256xf32>
    %16 = arith.maximumf %14, %15 : vector<32x256xf32>
    %c0_12 = arith.constant 0 : index
    %c0_13 = arith.constant 0 : index
    %17 = vector.load %arg6[%c0_12, %c0_13] : memref<32x256xf32, #tpu.memory_space<vmem>>, vector<32x256xf32>
    tpu.vector_store %arg6[%c0_12, %c0_13], %16 {strides = array<i32>} : memref<32x256xf32, #tpu.memory_space<vmem>>, vector<32x256xf32>,
    return
  }
  func.func @transform_0(%arg0: i32) -> (i32, i32) {
    %c0_i32 = arith.constant 0 : i32
    %c0_i32_0 = arith.constant 0 : i32
    return %arg0, %c0_i32 : i32, i32
  }
  func.func @transform_1(%arg0: i32) -> (i32, i32) {
    %c0_i32 = arith.constant 0 : i32
    %c0_i32_0 = arith.constant 0 : i32
    %c0_i32_1 = arith.constant 0 : i32
    return %c0_i32, %c0_i32_0 : i32, i32
  }
  func.func @transform_2(%arg0: i32) -> (i32, i32) {
    %c0_i32 = arith.constant 0 : i32
    %c0_i32_0 = arith.constant 0 : i32
    %c0_i32_1 = arith.constant 0 : i32
    return %c0_i32, %c0_i32_0 : i32, i32
  }
  func.func @transform_3(%arg0: i32) -> (i32, i32) {
    %c0_i32 = arith.constant 0 : i32
    %c0_i32_0 = arith.constant 0 : i32
    %c0_i32_1 = arith.constant 0 : i32
    return %c0_i32, %c0_i32_0 : i32, i32
  }
  func.func @transform_4(%arg0: i32) -> (i32, i32) {
    %c0_i32 = arith.constant 0 : i32
    %c0_i32_0 = arith.constant 0 : i32
    %c0_i32_1 = arith.constant 0 : i32
    return %c0_i32, %c0_i32_0 : i32, i32
  }
  func.func @transform_5(%arg0: i32) -> (i32, i32) {
    %c0_i32 = arith.constant 0 : i32
    %c0_i32_0 = arith.constant 0 : i32
    return %arg0, %c0_i32 : i32, i32
  }
}

</mosaic_0001>

<llo_original>
// kernel: tpu_custom_call.1
$region0: #{tpu_custom_call.1}
  #allocation0 [shape = 'u32[]', space=smem, size = 0x4, offset = 0x4, fixed_abs, tag = 'smem constant byte address 0x4 - core index']
  #allocation1 [shape = 'u32[144,128]{1,0:T(1,128)}', space=vmem, size = 0x12000, scoped, tag = 'internal scratch']
  %s0 = inlined_call_operand.hbm [shape: f32[32,256], index: 0, kind: input, shape index: {}]
  %s1 = inlined_call_operand.hbm [shape: bf16[256,1024], index: 1, kind: input, shape index: {}]
  %s2 = inlined_call_operand.hbm [shape: f32[1,1024], index: 2, kind: input, shape index: {}]
  %s3 = inlined_call_operand.hbm [shape: bf16[1024,256], index: 3, kind: input, shape index: {}]
  %s4 = inlined_call_operand.vmem [shape: f32[1,256], index: 4, kind: input, shape index: {}]
  %s5 = inlined_call_operand.hbm [shape: f32[32,256], index: 5, kind: output, shape index: {}]
  %s6 = sld [smem:[#allocation0]]
  $region46: #{tpu_custom_call.1} parent=0
    _
  %s8 = ssub.s32 1, %s6
  %s9 = scalar_select 0, %s8, %s6
  $region1: #{tpu_custom_call.1} parent=0
    #allocation2 [shape = 'u8[32768]{0}', space=vmem, size = 0x8000, scoped, tag = 'input window, operand 0, single buffered']
    #allocation3 [shape = 's32[1]{0}', space=sflag, size = 0x4, scoped, tag = 'scoped memory for tpu_custom_call.1']
    #allocation4 [shape = 's32[1]{0}', space=sflag, size = 0x4, scoped, tag = 'scoped memory for tpu_custom_call.1']
    #allocation5 [shape = 'u8[524288]{0}', space=vmem, size = 0x80000, scoped, tag = 'input window, operand 1, single buffered']
    #allocation6 [shape = 's32[1]{0}', space=sflag, size = 0x4, scoped, tag = 'scoped memory for tpu_custom_call.1']
    #allocation7 [shape = 'u8[4096]{0}', space=vmem, size = 0x1000, scoped, tag = 'input window, operand 2, single buffered']
    #allocation8 [shape = 'u8[524288]{0}', space=vmem, size = 0x80000, scoped, tag = 'input window, operand 3, single buffered']
    #allocation9 [shape = 's32[1]{0}', space=sflag, size = 0x4, scoped, tag = 'scoped memory for tpu_custom_call.1']
    #allocation10 [shape = 'u8[32768]{0}', space=vmem, size = 0x8000, scoped, tag = 'output window, operand 0, single buffered']
    %10 = vsyncpa [#allocation3], 0
    %11 = vsyncpa [#allocation6], 0
    %12 = vsyncpa [#allocation9], 0
    %13 = vsyncpa [#allocation4], 0
    // Predicated region
    $region2: #{tpu_custom_call.1} parent=1 // pred_check
      _
    $region3: #{tpu_custom_call.1} parent=1 // pred_check_branch
      %15 = sbr.rel (0) target = $region5
    $region4: #{tpu_custom_call.1} parent=1 // pred_region
      %s17 = ssub.s32 1024, 1024
      %18 = vsyncadd [#allocation3], %s17
      %s19 = sshll.u32 [#allocation2], 4
      %s20 = int_to_ptr.vmem [resolvable:$true] %s19
      %25 = dma.hbm_to_vmem [thread:$0]  %s0, 1024, %s20, [#allocation3], 256, 256, 16
    $region5: #{tpu_custom_call.1} parent=1 // pred_fallthru
      _
    // Predicated region
    $region6: #{tpu_custom_call.1} parent=1 // pred_check
      _
    $region7: #{tpu_custom_call.1} parent=1 // pred_check_branch
      %27 = sbr.rel (0) target = $region9
    $region8: #{tpu_custom_call.1} parent=1 // pred_region
      %s29 = ssub.s32 16384, 16384
      %30 = vsyncadd [#allocation6], %s29
      %s31 = sshll.u32 [#allocation5], 4
      %s32 = int_to_ptr.vmem [resolvable:$true] %s31
      %37 = dma.hbm_to_vmem [thread:$0]  %s1, 16384, %s32, [#allocation6], 512, 512, 32
    $region9: #{tpu_custom_call.1} parent=1 // pred_fallthru
      _
    // Predicated region
    $region10: #{tpu_custom_call.1} parent=1 // pred_check
      _
    $region11: #{tpu_custom_call.1} parent=1 // pred_check_branch
      %39 = sbr.rel (0) target = $region13
    $region12: #{tpu_custom_call.1} parent=1 // pred_region
      %s41 = ssub.s32 128, 128
      %42 = vsyncadd [#allocation6], %s41
      %s44 = sshll.u32 [#allocation7], 4
      %s45 = int_to_ptr.vmem [resolvable:$true] %s44
      %47 = dma.hbm_to_vmem [thread:$0]  %s2, 128, %s45, [#allocation6]
    $region13: #{tpu_custom_call.1} parent=1 // pred_fallthru
      _
    // Predicated region
    $region14: #{tpu_custom_call.1} parent=1 // pred_check
      _
    $region15: #{tpu_custom_call.1} parent=1 // pred_check_branch
      %49 = sbr.rel (0) target = $region17
    $region16: #{tpu_custom_call.1} parent=1 // pred_region
      %s51 = ssub.s32 16384, 16384
      %52 = vsyncadd [#allocation9], %s51
      %s53 = sshll.u32 [#allocation8], 4
      %s54 = int_to_ptr.vmem [resolvable:$true] %s53
      %59 = dma.hbm_to_vmem [thread:$0]  %s3, 16384, %s54, [#allocation9], 128, 128, 8
    $region17: #{tpu_custom_call.1} parent=1 // pred_fallthru
      _
    // Predicated region
    $region18: #{tpu_custom_call.1} parent=1 // pred_check
      _
    $region19: #{tpu_custom_call.1} parent=1 // pred_check_branch
      %61 = sbr.rel (0) target = $region21
    $region20: #{tpu_custom_call.1} parent=1 // pred_region
      _
    $region21: #{tpu_custom_call.1} parent=1 // pred_fallthru
      _
    // Predicated region
    $region22: #{tpu_custom_call.1} parent=1 // pred_check
      _
    $region23: #{tpu_custom_call.1} parent=1 // pred_check_branch
      %63 = sbr.rel (0) target = $region25
    $region24: #{tpu_custom_call.1} parent=1 // pred_region
      %64 = dma.done [#allocation3], 1024
    $region25: #{tpu_custom_call.1} parent=1 // pred_fallthru
      _
    // Predicated region
    $region26: #{tpu_custom_call.1} parent=1 // pred_check
      _
    $region27: #{tpu_custom_call.1} parent=1 // pred_check_branch
      %66 = sbr.rel (0) target = $region29
    $region28: #{tpu_custom_call.1} parent=1 // pred_region
      %67 = dma.done [#allocation6], 16384
    $region29: #{tpu_custom_call.1} parent=1 // pred_fallthru
      _
    // Predicated region
    $region30: #{tpu_custom_call.1} parent=1 // pred_check
      _
    $region31: #{tpu_custom_call.1} parent=1 // pred_check_branch
      %69 = sbr.rel (0) target = $region33
    $region32: #{tpu_custom_call.1} parent=1 // pred_region
      %70 = dma.done [#allocation6], 128
    $region33: #{tpu_custom_call.1} parent=1 // pred_fallthru
      _
    // Predicated region
    $region34: #{tpu_custom_call.1} parent=1 // pred_check
      _
    $region35: #{tpu_custom_call.1} parent=1 // pred_check_branch
      %72 = sbr.rel (0) target = $region37
    $region36: #{tpu_custom_call.1} parent=1 // pred_region
      %73 = dma.done [#allocation9], 16384
    $region37: #{tpu_custom_call.1} parent=1 // pred_fallthru
      _
    %v74 = vld [vmem:[#allocation2] sm:$0xff]
    %v75 = vld [vmem:[#allocation2 + $0x8] sm:$0xff]
    %v76 = vld [vmem:[#allocation2 + $0x10] sm:$0xff]
    %v77 = vld [vmem:[#allocation2 + $0x18] sm:$0xff]
    %v78 = vld [vmem:[#allocation2 + $0x20] sm:$0xff]
    %v79 = vld [vmem:[#allocation2 + $0x28] sm:$0xff]
    %v80 = vld [vmem:[#allocation2 + $0x30] sm:$0xff]
    %v81 = vld [vmem:[#allocation2 + $0x38] sm:$0xff]
    %v82 = vpack.c.bf16 %v76, %v74
    %v83 = vpack.c.bf16 %v77, %v75
    %v84 = vpack.c.bf16 %v80, %v78
    %v85 = vpack.c.bf16 %v81, %v79
    %v86 = vld [vmem:[#allocation5] sm:$0xff]
    %v87 = vld [vmem:[#allocation5 + $0x8] sm:$0xff]
    %v88 = vld [vmem:[#allocation5 + $0x10] sm:$0xff]
    %v89 = vld [vmem:[#allocation5 + $0x18] sm:$0xff]
    %v90 = vld [vmem:[#allocation5 + $0x20] sm:$0xff]
    %v91 = vld [vmem:[#allocation5 + $0x28] sm:$0xff]
    %v92 = vld [vmem:[#allocation5 + $0x30] sm:$0xff]
    %v93 = vld [vmem:[#allocation5 + $0x38] sm:$0xff]
    %v94 = vld [vmem:[#allocation5 + $0x40] sm:$0xff]
    %v95 = vld [vmem:[#allocation5 + $0x48] sm:$0xff]
    %v96 = vld [vmem:[#allocation5 + $0x50] sm:$0xff]
    %v97 = vld [vmem:[#allocation5 + $0x58] sm:$0xff]
    %v98 = vld [vmem:[#allocation5 + $0x60] sm:$0xff]
    %v99 = vld [vmem:[#allocation5 + $0x68] sm:$0xff]
    %v100 = vld [vmem:[#allocation5 + $0x70] sm:$0xff]
    %v101 = vld [vmem:[#allocation5 + $0x78] sm:$0xff]
    %v102 = vld [vmem:[#allocation5 + $0x80] sm:$0xff]
    %v103 = vld [vmem:[#allocation5 + $0x88] sm:$0xff]
    %v104 = vld [vmem:[#allocation5 + $0x90] sm:$0xff]
    %v105 = vld [vmem:[#allocation5 + $0x98] sm:$0xff]
    %v106 = vld [vmem:[#allocation5 + $0xa0] sm:$0xff]
    %v107 = vld [vmem:[#allocation5 + $0xa8] sm:$0xff]
    %v108 = vld [vmem:[#allocation5 + $0xb0] sm:$0xff]
    %v109 = vld [vmem:[#allocation5 + $0xb8] sm:$0xff]
    %v110 = vld [vmem:[#allocation5 + $0xc0] sm:$0xff]
    %v111 = vld [vmem:[#allocation5 + $0xc8] sm:$0xff]
    %v112 = vld [vmem:[#allocation5 + $0xd0] sm:$0xff]
    %v113 = vld [vmem:[#allocation5 + $0xd8] sm:$0xff]
    %v114 = vld [vmem:[#allocation5 + $0xe0] sm:$0xff]
    %v115 = vld [vmem:[#allocation5 + $0xe8] sm:$0xff]
    %v116 = vld [vmem:[#allocation5 + $0xf0] sm:$0xff]
    %v117 = vld [vmem:[#allocation5 + $0xf8] sm:$0xff]
    %v118 = vld [vmem:[#allocation5 + $0x100] sm:$0xff]
    %v119 = vld [vmem:[#allocation5 + $0x108] sm:$0xff]
    %v120 = vld [vmem:[#allocation5 + $0x110] sm:$0xff]
    %v121 = vld [vmem:[#allocation5 + $0x118] sm:$0xff]
    %v122 = vld [vmem:[#allocation5 + $0x120] sm:$0xff]
    %v123 = vld [vmem:[#allocation5 + $0x128] sm:$0xff]
    %v124 = vld [vmem:[#allocation5 + $0x130] sm:$0xff]
    %v125 = vld [vmem:[#allocation5 + $0x138] sm:$0xff]
    %v126 = vld [vmem:[#allocation5 + $0x140] sm:$0xff]
    %v127 = vld [vmem:[#allocation5 + $0x148] sm:$0xff]
    %v128 = vld [vmem:[#allocation5 + $0x150] sm:$0xff]
    %v129 = vld [vmem:[#allocation5 + $0x158] sm:$0xff]
    %v130 = vld [vmem:[#allocation5 + $0x160] sm:$0xff]
    %v131 = vld [vmem:[#allocation5 + $0x168] sm:$0xff]
    %v132 = vld [vmem:[#allocation5 + $0x170] sm:$0xff]
    %v133 = vld [vmem:[#allocation5 + $0x178] sm:$0xff]
    %v134 = vld [vmem:[#allocation5 + $0x180] sm:$0xff]
    %v135 = vld [vmem:[#allocation5 + $0x188] sm:$0xff]
    %v136 = vld [vmem:[#allocation5 + $0x190] sm:$0xff]
    %v137 = vld [vmem:[#allocation5 + $0x198] sm:$0xff]
    %v138 = vld [vmem:[#allocation5 + $0x1a0] sm:$0xff]
    %v139 = vld [vmem:[#allocation5 + $0x1a8] sm:$0xff]
    %v140 = vld [vmem:[#allocation5 + $0x1b0] sm:$0xff]
    %v141 = vld [vmem:[#allocation5 + $0x1b8] sm:$0xff]
    %v142 = vld [vmem:[#allocation5 + $0x1c0] sm:$0xff]
    %v143 = vld [vmem:[#allocation5 + $0x1c8] sm:$0xff]
    %v144 = vld [vmem:[#allocation5 + $0x1d0] sm:$0xff]
    %v145 = vld [vmem:[#allocation5 + $0x1d8] sm:$0xff]
    %v146 = vld [vmem:[#allocation5 + $0x1e0] sm:$0xff]
    %v147 = vld [vmem:[#allocation5 + $0x1e8] sm:$0xff]
    %v148 = vld [vmem:[#allocation5 + $0x1f0] sm:$0xff]
    %v149 = vld [vmem:[#allocation5 + $0x1f8] sm:$0xff]
    %v150 = vld [vmem:[#allocation5 + $0x200] sm:$0xff]
    %v151 = vld [vmem:[#allocation5 + $0x208] sm:$0xff]
    %v152 = vld [vmem:[#allocation5 + $0x210] sm:$0xff]
    %v153 = vld [vmem:[#allocation5 + $0x218] sm:$0xff]
    %v154 = vld [vmem:[#allocation5 + $0x220] sm:$0xff]
    %v155 = vld [vmem:[#allocation5 + $0x228] sm:$0xff]
    %v156 = vld [vmem:[#allocation5 + $0x230] sm:$0xff]
    %v157 = vld [vmem:[#allocation5 + $0x238] sm:$0xff]
    %v158 = vld [vmem:[#allocation5 + $0x240] sm:$0xff]
    %v159 = vld [vmem:[#allocation5 + $0x248] sm:$0xff]
    %v160 = vld [vmem:[#allocation5 + $0x250] sm:$0xff]
    %v161 = vld [vmem:[#allocation5 + $0x258] sm:$0xff]
    %v162 = vld [vmem:[#allocation5 + $0x260] sm:$0xff]
    %v163 = vld [vmem:[#allocation5 + $0x268] sm:$0xff]
    %v164 = vld [vmem:[#allocation5 + $0x270] sm:$0xff]
    %v165 = vld [vmem:[#allocation5 + $0x278] sm:$0xff]
    %v166 = vld [vmem:[#allocation5 + $0x280] sm:$0xff]
    %v167 = vld [vmem:[#allocation5 + $0x288] sm:$0xff]
    %v168 = vld [vmem:[#allocation5 + $0x290] sm:$0xff]
    %v169 = vld [vmem:[#allocation5 + $0x298] sm:$0xff]
    %v170 = vld [vmem:[#allocation5 + $0x2a0] sm:$0xff]
    %v171 = vld [vmem:[#allocation5 + $0x2a8] sm:$0xff]
    %v172 = vld [vmem:[#allocation5 + $0x2b0] sm:$0xff]
    %v173 = vld [vmem:[#allocation5 + $0x2b8] sm:$0xff]
    %v174 = vld [vmem:[#allocation5 + $0x2c0] sm:$0xff]
    %v175 = vld [vmem:[#allocation5 + $0x2c8] sm:$0xff]
    %v176 = vld [vmem:[#allocation5 + $0x2d0] sm:$0xff]
    %v177 = vld [vmem:[#allocation5 + $0x2d8] sm:$0xff]
    %v178 = vld [vmem:[#allocation5 + $0x2e0] sm:$0xff]
    %v179 = vld [vmem:[#allocation5 + $0x2e8] sm:$0xff]
    %v180 = vld [vmem:[#allocation5 + $0x2f0] sm:$0xff]
    %v181 = vld [vmem:[#allocation5 + $0x2f8] sm:$0xff]
    %v182 = vld [vmem:[#allocation5 + $0x300] sm:$0xff]
    %v183 = vld [vmem:[#allocation5 + $0x308] sm:$0xff]
    %v184 = vld [vmem:[#allocation5 + $0x310] sm:$0xff]
    %v185 = vld [vmem:[#allocation5 + $0x318] sm:$0xff]
    %v186 = vld [vmem:[#allocation5 + $0x320] sm:$0xff]
    %v187 = vld [vmem:[#allocation5 + $0x328] sm:$0xff]
    %v188 = vld [vmem:[#allocation5 + $0x330] sm:$0xff]
    %v189 = vld [vmem:[#allocation5 + $0x338] sm:$0xff]
    %v190 = vld [vmem:[#allocation5 + $0x340] sm:$0xff]
    %v191 = vld [vmem:[#allocation5 + $0x348] sm:$0xff]
    %v192 = vld [vmem:[#allocation5 + $0x350] sm:$0xff]
    %v193 = vld [vmem:[#allocation5 + $0x358] sm:$0xff]
    %v194 = vld [vmem:[#allocation5 + $0x360] sm:$0xff]
    %v195 = vld [vmem:[#allocation5 + $0x368] sm:$0xff]
    %v196 = vld [vmem:[#allocation5 + $0x370] sm:$0xff]
    %v197 = vld [vmem:[#allocation5 + $0x378] sm:$0xff]
    %v198 = vld [vmem:[#allocation5 + $0x380] sm:$0xff]
    %v199 = vld [vmem:[#allocation5 + $0x388] sm:$0xff]
    %v200 = vld [vmem:[#allocation5 + $0x390] sm:$0xff]
    %v201 = vld [vmem:[#allocation5 + $0x398] sm:$0xff]
    %v202 = vld [vmem:[#allocation5 + $0x3a0] sm:$0xff]
    %v203 = vld [vmem:[#allocation5 + $0x3a8] sm:$0xff]
    %v204 = vld [vmem:[#allocation5 + $0x3b0] sm:$0xff]
    %v205 = vld [vmem:[#allocation5 + $0x3b8] sm:$0xff]
    %v206 = vld [vmem:[#allocation5 + $0x3c0] sm:$0xff]
    %v207 = vld [vmem:[#allocation5 + $0x3c8] sm:$0xff]
    %v208 = vld [vmem:[#allocation5 + $0x3d0] sm:$0xff]
    %v209 = vld [vmem:[#allocation5 + $0x3d8] sm:$0xff]
    %v210 = vld [vmem:[#allocation5 + $0x3e0] sm:$0xff]
    %v211 = vld [vmem:[#allocation5 + $0x3e8] sm:$0xff]
    %v212 = vld [vmem:[#allocation5 + $0x3f0] sm:$0xff]
    %v213 = vld [vmem:[#allocation5 + $0x3f8] sm:$0xff]
    %v214 = vld [vmem:[#allocation7] sm:$0xff]
    %v216 = vlaneseq
    %v217 = vshrl.u32 %v216, 7
    %v218 = vsub.s32 0, %v217
    %v219 = vrot.slane %v214, %v218
    %v220 = vlaneseq
    %v221 = vshrl.u32 %v220, 7
    %v222 = vsub.s32 1, %v221
    %v223 = vrot.slane %v214, %v222
    %v224 = vlaneseq
    %v225 = vshrl.u32 %v224, 7
    %v226 = vsub.s32 2, %v225
    %v227 = vrot.slane %v214, %v226
    %v228 = vlaneseq
    %v229 = vshrl.u32 %v228, 7
    %v230 = vsub.s32 3, %v229
    %v231 = vrot.slane %v214, %v230
    %v232 = vlaneseq
    %v233 = vshrl.u32 %v232, 7
    %v234 = vsub.s32 4, %v233
    %v235 = vrot.slane %v214, %v234
    %v236 = vlaneseq
    %v237 = vshrl.u32 %v236, 7
    %v238 = vsub.s32 5, %v237
    %v239 = vrot.slane %v214, %v238
    %v240 = vlaneseq
    %v241 = vshrl.u32 %v240, 7
    %v242 = vsub.s32 6, %v241
    %v243 = vrot.slane %v214, %v242
    %v244 = vlaneseq
    %v245 = vshrl.u32 %v244, 7
    %v246 = vsub.s32 7, %v245
    %v247 = vrot.slane %v214, %v246
    %v384 = vunpack.c.l.b16 %v86
    %v385 = vunpack.c.h.b16 %v86
    %v386 = vunpack.c.l.b16 %v87
    %v387 = vunpack.c.h.b16 %v87
    %v388 = vunpack.c.l.b16 %v88
    %v389 = vunpack.c.h.b16 %v88
    %v390 = vunpack.c.l.b16 %v89
    %v391 = vunpack.c.h.b16 %v89
    %v392 = vunpack.c.l.b16 %v90
    %v393 = vunpack.c.h.b16 %v90
    %v394 = vunpack.c.l.b16 %v91
    %v395 = vunpack.c.h.b16 %v91
    %v396 = vunpack.c.l.b16 %v92
    %v397 = vunpack.c.h.b16 %v92
    %v398 = vunpack.c.l.b16 %v93
    %v399 = vunpack.c.h.b16 %v93
    %v400 = vunpack.c.l.b16 %v94
    %v401 = vunpack.c.h.b16 %v94
    %v402 = vunpack.c.l.b16 %v95
    %v403 = vunpack.c.h.b16 %v95
    %v404 = vunpack.c.l.b16 %v96
    %v405 = vunpack.c.h.b16 %v96
    %v406 = vunpack.c.l.b16 %v97
    %v407 = vunpack.c.h.b16 %v97
    %v408 = vunpack.c.l.b16 %v98
    %v409 = vunpack.c.h.b16 %v98
    %v410 = vunpack.c.l.b16 %v99
    %v411 = vunpack.c.h.b16 %v99
    %v412 = vunpack.c.l.b16 %v100
    %v413 = vunpack.c.h.b16 %v100
    %v414 = vunpack.c.l.b16 %v101
    %v415 = vunpack.c.h.b16 %v101
    %v416 = vunpack.c.l.b16 %v102
    %v417 = vunpack.c.h.b16 %v102
    %v418 = vunpack.c.l.b16 %v103
    %v419 = vunpack.c.h.b16 %v103
    %v420 = vunpack.c.l.b16 %v104
    %v421 = vunpack.c.h.b16 %v104
    %v422 = vunpack.c.l.b16 %v105
    %v423 = vunpack.c.h.b16 %v105
    %v424 = vunpack.c.l.b16 %v106
    %v425 = vunpack.c.h.b16 %v106
    %v426 = vunpack.c.l.b16 %v107
    %v427 = vunpack.c.h.b16 %v107
    %v428 = vunpack.c.l.b16 %v108
    %v429 = vunpack.c.h.b16 %v108
    %v430 = vunpack.c.l.b16 %v109
    %v431 = vunpack.c.h.b16 %v109
    %v432 = vunpack.c.l.b16 %v110
    %v433 = vunpack.c.h.b16 %v110
    %v434 = vunpack.c.l.b16 %v111
    %v435 = vunpack.c.h.b16 %v111
    %v436 = vunpack.c.l.b16 %v112
    %v437 = vunpack.c.h.b16 %v112
    %v438 = vunpack.c.l.b16 %v113
    %v439 = vunpack.c.h.b16 %v113
    %v440 = vunpack.c.l.b16 %v114
    %v441 = vunpack.c.h.b16 %v114
    %v442 = vunpack.c.l.b16 %v115
    %v443 = vunpack.c.h.b16 %v115
    %v444 = vunpack.c.l.b16 %v116
    %v445 = vunpack.c.h.b16 %v116
    %v446 = vunpack.c.l.b16 %v117
    %v447 = vunpack.c.h.b16 %v117
    %v448 = vunpack.c.l.b16 %v118
    %v449 = vunpack.c.h.b16 %v118
    %v450 = vunpack.c.l.b16 %v119
    %v451 = vunpack.c.h.b16 %v119
    %v452 = vunpack.c.l.b16 %v120
    %v453 = vunpack.c.h.b16 %v120
    %v454 = vunpack.c.l.b16 %v121
    %v455 = vunpack.c.h.b16 %v121
    %v456 = vunpack.c.l.b16 %v122
    %v457 = vunpack.c.h.b16 %v122
    %v458 = vunpack.c.l.b16 %v123
    %v459 = vunpack.c.h.b16 %v123
    %v460 = vunpack.c.l.b16 %v124
    %v461 = vunpack.c.h.b16 %v124
    %v462 = vunpack.c.l.b16 %v125
    %v463 = vunpack.c.h.b16 %v125
    %v464 = vunpack.c.l.b16 %v126
    %v465 = vunpack.c.h.b16 %v126
    %v466 = vunpack.c.l.b16 %v127
    %v467 = vunpack.c.h.b16 %v127
    %v468 = vunpack.c.l.b16 %v128
    %v469 = vunpack.c.h.b16 %v128
    %v470 = vunpack.c.l.b16 %v129
    %v471 = vunpack.c.h.b16 %v129
    %v472 = vunpack.c.l.b16 %v130
    %v473 = vunpack.c.h.b16 %v130
    %v474 = vunpack.c.l.b16 %v131
    %v475 = vunpack.c.h.b16 %v131
    %v476 = vunpack.c.l.b16 %v132
    %v477 = vunpack.c.h.b16 %v132
    %v478 = vunpack.c.l.b16 %v133
    %v479 = vunpack.c.h.b16 %v133
    %v480 = vunpack.c.l.b16 %v134
    %v481 = vunpack.c.h.b16 %v134
    %v482 = vunpack.c.l.b16 %v135
    %v483 = vunpack.c.h.b16 %v135
    %v484 = vunpack.c.l.b16 %v136
    %v485 = vunpack.c.h.b16 %v136
    %v486 = vunpack.c.l.b16 %v137
    %v487 = vunpack.c.h.b16 %v137
    %v488 = vunpack.c.l.b16 %v138
    %v489 = vunpack.c.h.b16 %v138
    %v490 = vunpack.c.l.b16 %v139
    %v491 = vunpack.c.h.b16 %v139
    %v492 = vunpack.c.l.b16 %v140
    %v493 = vunpack.c.h.b16 %v140
    %v494 = vunpack.c.l.b16 %v141
    %v495 = vunpack.c.h.b16 %v141
    %v496 = vunpack.c.l.b16 %v142
    %v497 = vunpack.c.h.b16 %v142
    %v498 = vunpack.c.l.b16 %v143
    %v499 = vunpack.c.h.b16 %v143
    %v500 = vunpack.c.l.b16 %v144
    %v501 = vunpack.c.h.b16 %v144
    %v502 = vunpack.c.l.b16 %v145
    %v503 = vunpack.c.h.b16 %v145
    %v504 = vunpack.c.l.b16 %v146
    %v505 = vunpack.c.h.b16 %v146
    %v506 = vunpack.c.l.b16 %v147
    %v507 = vunpack.c.h.b16 %v147
    %v508 = vunpack.c.l.b16 %v148
    %v509 = vunpack.c.h.b16 %v148
    %v510 = vunpack.c.l.b16 %v149
    %v511 = vunpack.c.h.b16 %v149
    %v512 = vunpack.c.l.b16 %v150
    %v513 = vunpack.c.h.b16 %v150
    %v514 = vunpack.c.l.b16 %v151
    %v515 = vunpack.c.h.b16 %v151
    %v516 = vunpack.c.l.b16 %v152
    %v517 = vunpack.c.h.b16 %v152
    %v518 = vunpack.c.l.b16 %v153
    %v519 = vunpack.c.h.b16 %v153
    %v520 = vunpack.c.l.b16 %v154
    %v521 = vunpack.c.h.b16 %v154
    %v522 = vunpack.c.l.b16 %v155
    %v523 = vunpack.c.h.b16 %v155
    %v524 = vunpack.c.l.b16 %v156
    %v525 = vunpack.c.h.b16 %v156
    %v526 = vunpack.c.l.b16 %v157
    %v527 = vunpack.c.h.b16 %v157
    %v528 = vunpack.c.l.b16 %v158
    %v529 = vunpack.c.h.b16 %v158
    %v530 = vunpack.c.l.b16 %v159
    %v531 = vunpack.c.h.b16 %v159
    %v532 = vunpack.c.l.b16 %v160
    %v533 = vunpack.c.h.b16 %v160
    %v534 = vunpack.c.l.b16 %v161
    %v535 = vunpack.c.h.b16 %v161
    %v536 = vunpack.c.l.b16 %v162
    %v537 = vunpack.c.h.b16 %v162
    %v538 = vunpack.c.l.b16 %v163
    %v539 = vunpack.c.h.b16 %v163
    %v540 = vunpack.c.l.b16 %v164
    %v541 = vunpack.c.h.b16 %v164
    %v542 = vunpack.c.l.b16 %v165
    %v543 = vunpack.c.h.b16 %v165
    %v544 = vunpack.c.l.b16 %v166
    %v545 = vunpack.c.h.b16 %v166
    %v546 = vunpack.c.l.b16 %v167
    %v547 = vunpack.c.h.b16 %v167
    %v548 = vunpack.c.l.b16 %v168
    %v549 = vunpack.c.h.b16 %v168
    %v550 = vunpack.c.l.b16 %v169
    %v551 = vunpack.c.h.b16 %v169
    %v552 = vunpack.c.l.b16 %v170
    %v553 = vunpack.c.h.b16 %v170
    %v554 = vunpack.c.l.b16 %v171
    %v555 = vunpack.c.h.b16 %v171
    %v556 = vunpack.c.l.b16 %v172
    %v557 = vunpack.c.h.b16 %v172
    %v558 = vunpack.c.l.b16 %v173
    %v559 = vunpack.c.h.b16 %v173
    %v560 = vunpack.c.l.b16 %v174
    %v561 = vunpack.c.h.b16 %v174
    %v562 = vunpack.c.l.b16 %v175
    %v563 = vunpack.c.h.b16 %v175
    %v564 = vunpack.c.l.b16 %v176
    %v565 = vunpack.c.h.b16 %v176
    %v566 = vunpack.c.l.b16 %v177
    %v567 = vunpack.c.h.b16 %v177
    %v568 = vunpack.c.l.b16 %v178
    %v569 = vunpack.c.h.b16 %v178
    %v570 = vunpack.c.l.b16 %v179
    %v571 = vunpack.c.h.b16 %v179
    %v572 = vunpack.c.l.b16 %v180
    %v573 = vunpack.c.h.b16 %v180
    %v574 = vunpack.c.l.b16 %v181
    %v575 = vunpack.c.h.b16 %v181
    %v576 = vunpack.c.l.b16 %v182
    %v577 = vunpack.c.h.b16 %v182
    %v578 = vunpack.c.l.b16 %v183
    %v579 = vunpack.c.h.b16 %v183
    %v580 = vunpack.c.l.b16 %v184
    %v581 = vunpack.c.h.b16 %v184
    %v582 = vunpack.c.l.b16 %v185
    %v583 = vunpack.c.h.b16 %v185
    %v584 = vunpack.c.l.b16 %v186
    %v585 = vunpack.c.h.b16 %v186
    %v586 = vunpack.c.l.b16 %v187
    %v587 = vunpack.c.h.b16 %v187
    %v588 = vunpack.c.l.b16 %v188
    %v589 = vunpack.c.h.b16 %v188
    %v590 = vunpack.c.l.b16 %v189
    %v591 = vunpack.c.h.b16 %v189
    %v592 = vunpack.c.l.b16 %v190
    %v593 = vunpack.c.h.b16 %v190
    %v594 = vunpack.c.l.b16 %v191
    %v595 = vunpack.c.h.b16 %v191
    %v596 = vunpack.c.l.b16 %v192
    %v597 = vunpack.c.h.b16 %v192
    %v598 = vunpack.c.l.b16 %v193
    %v599 = vunpack.c.h.b16 %v193
    %v600 = vunpack.c.l.b16 %v194
    %v601 = vunpack.c.h.b16 %v194
    %v602 = vunpack.c.l.b16 %v195
    %v603 = vunpack.c.h.b16 %v195
    %v604 = vunpack.c.l.b16 %v196
    %v605 = vunpack.c.h.b16 %v196
    %v606 = vunpack.c.l.b16 %v197
    %v607 = vunpack.c.h.b16 %v197
    %v608 = vunpack.c.l.b16 %v198
    %v609 = vunpack.c.h.b16 %v198
    %v610 = vunpack.c.l.b16 %v199
    %v611 = vunpack.c.h.b16 %v199
    %v612 = vunpack.c.l.b16 %v200
    %v613 = vunpack.c.h.b16 %v200
    %v614 = vunpack.c.l.b16 %v201
    %v615 = vunpack.c.h.b16 %v201
    %v616 = vunpack.c.l.b16 %v202
    %v617 = vunpack.c.h.b16 %v202
    %v618 = vunpack.c.l.b16 %v203
    %v619 = vunpack.c.h.b16 %v203
    %v620 = vunpack.c.l.b16 %v204
    %v621 = vunpack.c.h.b16 %v204
    %v622 = vunpack.c.l.b16 %v205
    %v623 = vunpack.c.h.b16 %v205
    %v624 = vunpack.c.l.b16 %v206
    %v625 = vunpack.c.h.b16 %v206
    %v626 = vunpack.c.l.b16 %v207
    %v627 = vunpack.c.h.b16 %v207
    %v628 = vunpack.c.l.b16 %v208
    %v629 = vunpack.c.h.b16 %v208
    %v630 = vunpack.c.l.b16 %v209
    %v631 = vunpack.c.h.b16 %v209
    %v632 = vunpack.c.l.b16 %v210
    %v633 = vunpack.c.h.b16 %v210
    %v634 = vunpack.c.l.b16 %v211
    %v635 = vunpack.c.h.b16 %v211
    %v636 = vunpack.c.l.b16 %v212
    %v637 = vunpack.c.h.b16 %v212
    %v638 = vunpack.c.l.b16 %v213
    %v639 = vunpack.c.h.b16 %v213
    %v640 = vpack.c.b16 %v392, %v384
    %v641 = vpack.c.b16 %v393, %v385
    %v642 = vpack.c.b16 %v394, %v386
    %v643 = vpack.c.b16 %v395, %v387
    %v644 = vpack.c.b16 %v396, %v388
    %v645 = vpack.c.b16 %v397, %v389
    %v646 = vpack.c.b16 %v398, %v390
    %v647 = vpack.c.b16 %v399, %v391
    %v648 = vpack.c.b16 %v408, %v400
    %v649 = vpack.c.b16 %v409, %v401
    %v650 = vpack.c.b16 %v410, %v402
    %v651 = vpack.c.b16 %v411, %v403
    %v652 = vpack.c.b16 %v412, %v404
    %v653 = vpack.c.b16 %v413, %v405
    %v654 = vpack.c.b16 %v414, %v406
    %v655 = vpack.c.b16 %v415, %v407
    %v656 = vpack.c.b16 %v424, %v416
    %v657 = vpack.c.b16 %v425, %v417
    %v658 = vpack.c.b16 %v426, %v418
    %v659 = vpack.c.b16 %v427, %v419
    %v660 = vpack.c.b16 %v428, %v420
    %v661 = vpack.c.b16 %v429, %v421
    %v662 = vpack.c.b16 %v430, %v422
    %v663 = vpack.c.b16 %v431, %v423
    %v664 = vpack.c.b16 %v440, %v432
    %v665 = vpack.c.b16 %v441, %v433
    %v666 = vpack.c.b16 %v442, %v434
    %v667 = vpack.c.b16 %v443, %v435
    %v668 = vpack.c.b16 %v444, %v436
    %v669 = vpack.c.b16 %v445, %v437
    %v670 = vpack.c.b16 %v446, %v438
    %v671 = vpack.c.b16 %v447, %v439
    %v672 = vpack.c.b16 %v456, %v448
    %v673 = vpack.c.b16 %v457, %v449
    %v674 = vpack.c.b16 %v458, %v450
    %v675 = vpack.c.b16 %v459, %v451
    %v676 = vpack.c.b16 %v460, %v452
    %v677 = vpack.c.b16 %v461, %v453
    %v678 = vpack.c.b16 %v462, %v454
    %v679 = vpack.c.b16 %v463, %v455
    %v680 = vpack.c.b16 %v472, %v464
    %v681 = vpack.c.b16 %v473, %v465
    %v682 = vpack.c.b16 %v474, %v466
    %v683 = vpack.c.b16 %v475, %v467
    %v684 = vpack.c.b16 %v476, %v468
    %v685 = vpack.c.b16 %v477, %v469
    %v686 = vpack.c.b16 %v478, %v470
    %v687 = vpack.c.b16 %v479, %v471
    %v688 = vpack.c.b16 %v488, %v480
    %v689 = vpack.c.b16 %v489, %v481
    %v690 = vpack.c.b16 %v490, %v482
    %v691 = vpack.c.b16 %v491, %v483
    %v692 = vpack.c.b16 %v492, %v484
    %v693 = vpack.c.b16 %v493, %v485
    %v694 = vpack.c.b16 %v494, %v486
    %v695 = vpack.c.b16 %v495, %v487
    %v696 = vpack.c.b16 %v504, %v496
    %v697 = vpack.c.b16 %v505, %v497
    %v698 = vpack.c.b16 %v506, %v498
    %v699 = vpack.c.b16 %v507, %v499
    %v700 = vpack.c.b16 %v508, %v500
    %v701 = vpack.c.b16 %v509, %v501
    %v702 = vpack.c.b16 %v510, %v502
    %v703 = vpack.c.b16 %v511, %v503
    %v704 = vpack.c.b16 %v520, %v512
    %v705 = vpack.c.b16 %v521, %v513
    %v706 = vpack.c.b16 %v522, %v514
    %v707 = vpack.c.b16 %v523, %v515
    %v708 = vpack.c.b16 %v524, %v516
    %v709 = vpack.c.b16 %v525, %v517
    %v710 = vpack.c.b16 %v526, %v518
    %v711 = vpack.c.b16 %v527, %v519
    %v712 = vpack.c.b16 %v536, %v528
    %v713 = vpack.c.b16 %v537, %v529
    %v714 = vpack.c.b16 %v538, %v530
    %v715 = vpack.c.b16 %v539, %v531
    %v716 = vpack.c.b16 %v540, %v532
    %v717 = vpack.c.b16 %v541, %v533
    %v718 = vpack.c.b16 %v542, %v534
    %v719 = vpack.c.b16 %v543, %v535
    %v720 = vpack.c.b16 %v552, %v544
    %v721 = vpack.c.b16 %v553, %v545
    %v722 = vpack.c.b16 %v554, %v546
    %v723 = vpack.c.b16 %v555, %v547
    %v724 = vpack.c.b16 %v556, %v548
    %v725 = vpack.c.b16 %v557, %v549
    %v726 = vpack.c.b16 %v558, %v550
    %v727 = vpack.c.b16 %v559, %v551
    %v728 = vpack.c.b16 %v568, %v560
    %v729 = vpack.c.b16 %v569, %v561
    %v730 = vpack.c.b16 %v570, %v562
    %v731 = vpack.c.b16 %v571, %v563
    %v732 = vpack.c.b16 %v572, %v564
    %v733 = vpack.c.b16 %v573, %v565
    %v734 = vpack.c.b16 %v574, %v566
    %v735 = vpack.c.b16 %v575, %v567
    %v736 = vpack.c.b16 %v584, %v576
    %v737 = vpack.c.b16 %v585, %v577
    %v738 = vpack.c.b16 %v586, %v578
    %v739 = vpack.c.b16 %v587, %v579
    %v740 = vpack.c.b16 %v588, %v580
    %v741 = vpack.c.b16 %v589, %v581
    %v742 = vpack.c.b16 %v590, %v582
    %v743 = vpack.c.b16 %v591, %v583
    %v744 = vpack.c.b16 %v600, %v592
    %v745 = vpack.c.b16 %v601, %v593
    %v746 = vpack.c.b16 %v602, %v594
    %v747 = vpack.c.b16 %v603, %v595
    %v748 = vpack.c.b16 %v604, %v596
    %v749 = vpack.c.b16 %v605, %v597
    %v750 = vpack.c.b16 %v606, %v598
    %v751 = vpack.c.b16 %v607, %v599
    %v752 = vpack.c.b16 %v616, %v608
    %v753 = vpack.c.b16 %v617, %v609
    %v754 = vpack.c.b16 %v618, %v610
    %v755 = vpack.c.b16 %v619, %v611
    %v756 = vpack.c.b16 %v620, %v612
    %v757 = vpack.c.b16 %v621, %v613
    %v758 = vpack.c.b16 %v622, %v614
    %v759 = vpack.c.b16 %v623, %v615
    %v760 = vpack.c.b16 %v632, %v624
    %v761 = vpack.c.b16 %v633, %v625
    %v762 = vpack.c.b16 %v634, %v626
    %v763 = vpack.c.b16 %v635, %v627
    %v764 = vpack.c.b16 %v636, %v628
    %v765 = vpack.c.b16 %v637, %v629
    %v766 = vpack.c.b16 %v638, %v630
    %v767 = vpack.c.b16 %v639, %v631
    %896 = vmatprep.subr.bf16.mxu0 %v641
    %897 = vmatpush1.bf16.msra.mxu0 %v640
    %898 = vmatprep.subr.bf16.mxu0 %v649
    %899 = vmatpush1.bf16.msra.mxu0 %v648
    %900 = vmatprep.subr.bf16.mxu0 %v657
    %901 = vmatpush1.bf16.msra.mxu0 %v656
    %902 = vmatprep.subr.bf16.mxu0 %v665
    %903 = vmatpush1.bf16.msra.mxu0 %v664
    %904 = vmatprep.subr.bf16.mxu0 %v673
    %905 = vmatpush1.bf16.msra.mxu0 %v672
    %906 = vmatprep.subr.bf16.mxu0 %v681
    %907 = vmatpush1.bf16.msra.mxu0 %v680
    %908 = vmatprep.subr.bf16.mxu0 %v689
    %909 = vmatpush1.bf16.msra.mxu0 %v688
    %910 = vmatprep.subr.bf16.mxu0 %v697
    %911 = vmatpush1.bf16.msra.mxu0 %v696
    %912 = vmatprep.subr.bf16.mxu0 %v705
    %913 = vmatpush1.bf16.msra.mxu0 %v704
    %914 = vmatprep.subr.bf16.mxu0 %v713
    %915 = vmatpush1.bf16.msra.mxu0 %v712
    %916 = vmatprep.subr.bf16.mxu0 %v721
    %917 = vmatpush1.bf16.msra.mxu0 %v720
    %918 = vmatprep.subr.bf16.mxu0 %v729
    %919 = vmatpush1.bf16.msra.mxu0 %v728
    %920 = vmatprep.subr.bf16.mxu0 %v737
    %921 = vmatpush1.bf16.msra.mxu0 %v736
    %922 = vmatprep.subr.bf16.mxu0 %v745
    %923 = vmatpush1.bf16.msra.mxu0 %v744
    %924 = vmatprep.subr.bf16.mxu0 %v753
    %925 = vmatpush1.bf16.msra.mxu0 %v752
    %926 = vmatprep.subr.bf16.mxu0 %v761
    %927 = vmatpush1.bf16.msra.mxu0 %v760
    %928 = vmatprep.mubr.bf16.mxu0 %v83
    %929 = vmatmul.mubr.bf16.gmra.mrb[0].mxu0 %v82
    %v930 = vpop.f32.mrb[0].mxu0
    %v931 = vadd.f32 %v219, %v930
    %v932 = vpop.f32.mrb[0].mxu0
    %v933 = vadd.f32 %v223, %v932
    %v934 = vpop.f32.mrb[0].mxu0
    %v935 = vadd.f32 %v219, %v934
    %v936 = vpop.f32.mrb[0].mxu0
    %v937 = vadd.f32 %v223, %v936
    %938 = vmatprep.mubr.bf16.mxu0 %v85
    %939 = vmatmul.mubr.bf16.gmra.mrb[0].mxu0 %v84
    %v940 = vpop.f32.mrb[0].mxu0
    %v941 = vadd.f32 %v219, %v940
    %v942 = vpop.f32.mrb[0].mxu0
    %v943 = vadd.f32 %v223, %v942
    %v944 = vpop.f32.mrb[0].mxu0
    %v945 = vadd.f32 %v219, %v944
    %v946 = vpop.f32.mrb[0].mxu0
    %v947 = vadd.f32 %v223, %v946
    %948 = vdwg.mxu0
    %949 = vmatprep.subr.bf16.mxu0 %v643
    %950 = vmatpush1.bf16.msra.mxu0 %v642
    %951 = vmatprep.subr.bf16.mxu0 %v651
    %952 = vmatpush1.bf16.msra.mxu0 %v650
    %953 = vmatprep.subr.bf16.mxu0 %v659
    %954 = vmatpush1.bf16.msra.mxu0 %v658
    %955 = vmatprep.subr.bf16.mxu0 %v667
    %956 = vmatpush1.bf16.msra.mxu0 %v666
    %957 = vmatprep.subr.bf16.mxu0 %v675
    %958 = vmatpush1.bf16.msra.mxu0 %v674
    %959 = vmatprep.subr.bf16.mxu0 %v683
    %960 = vmatpush1.bf16.msra.mxu0 %v682
    %961 = vmatprep.subr.bf16.mxu0 %v691
    %962 = vmatpush1.bf16.msra.mxu0 %v690
    %963 = vmatprep.subr.bf16.mxu0 %v699
    %964 = vmatpush1.bf16.msra.mxu0 %v698
    %965 = vmatprep.subr.bf16.mxu0 %v707
    %966 = vmatpush1.bf16.msra.mxu0 %v706
    %967 = vmatprep.subr.bf16.mxu0 %v715
    %968 = vmatpush1.bf16.msra.mxu0 %v714
    %969 = vmatprep.subr.bf16.mxu0 %v723
    %970 = vmatpush1.bf16.msra.mxu0 %v722
    %971 = vmatprep.subr.bf16.mxu0 %v731
    %972 = vmatpush1.bf16.msra.mxu0 %v730
    %973 = vmatprep.subr.bf16.mxu0 %v739
    %974 = vmatpush1.bf16.msra.mxu0 %v738
    %975 = vmatprep.subr.bf16.mxu0 %v747
    %976 = vmatpush1.bf16.msra.mxu0 %v746
    %977 = vmatprep.subr.bf16.mxu0 %v755
    %978 = vmatpush1.bf16.msra.mxu0 %v754
    %979 = vmatprep.subr.bf16.mxu0 %v763
    %980 = vmatpush1.bf16.msra.mxu0 %v762
    %981 = vmatprep.mubr.bf16.mxu0 %v83
    %982 = vmatmul.mubr.bf16.gmra.mrb[0].mxu0 %v82
    %v983 = vpop.f32.mrb[0].mxu0
    %v984 = vadd.f32 %v227, %v983
    %v985 = vpop.f32.mrb[0].mxu0
    %v986 = vadd.f32 %v231, %v985
    %v987 = vpop.f32.mrb[0].mxu0
    %v988 = vadd.f32 %v227, %v987
    %v989 = vpop.f32.mrb[0].mxu0
    %v990 = vadd.f32 %v231, %v989
    %991 = vmatprep.mubr.bf16.mxu0 %v85
    %992 = vmatmul.mubr.bf16.gmra.mrb[0].mxu0 %v84
    %v993 = vpop.f32.mrb[0].mxu0
    %v994 = vadd.f32 %v227, %v993
    %v995 = vpop.f32.mrb[0].mxu0
    %v996 = vadd.f32 %v231, %v995
    %v997 = vpop.f32.mrb[0].mxu0
    %v998 = vadd.f32 %v227, %v997
    %v999 = vpop.f32.mrb[0].mxu0
    %v1000 = vadd.f32 %v231, %v999
    %1001 = vdwg.mxu0
    %1002 = vmatprep.subr.bf16.mxu0 %v645
    %1003 = vmatpush1.bf16.msra.mxu0 %v644
    %1004 = vmatprep.subr.bf16.mxu0 %v653
    %1005 = vmatpush1.bf16.msra.mxu0 %v652
    %1006 = vmatprep.subr.bf16.mxu0 %v661
    %1007 = vmatpush1.bf16.msra.mxu0 %v660
    %1008 = vmatprep.subr.bf16.mxu0 %v669
    %1009 = vmatpush1.bf16.msra.mxu0 %v668
    %1010 = vmatprep.subr.bf16.mxu0 %v677
    %1011 = vmatpush1.bf16.msra.mxu0 %v676
    %1012 = vmatprep.subr.bf16.mxu0 %v685
    %1013 = vmatpush1.bf16.msra.mxu0 %v684
    %1014 = vmatprep.subr.bf16.mxu0 %v693
    %1015 = vmatpush1.bf16.msra.mxu0 %v692
    %1016 = vmatprep.subr.bf16.mxu0 %v701
    %1017 = vmatpush1.bf16.msra.mxu0 %v700
    %1018 = vmatprep.subr.bf16.mxu0 %v709
    %1019 = vmatpush1.bf16.msra.mxu0 %v708
    %1020 = vmatprep.subr.bf16.mxu0 %v717
    %1021 = vmatpush1.bf16.msra.mxu0 %v716
    %1022 = vmatprep.subr.bf16.mxu0 %v725
    %1023 = vmatpush1.bf16.msra.mxu0 %v724
    %1024 = vmatprep.subr.bf16.mxu0 %v733
    %1025 = vmatpush1.bf16.msra.mxu0 %v732
    %1026 = vmatprep.subr.bf16.mxu0 %v741
    %1027 = vmatpush1.bf16.msra.mxu0 %v740
    %1028 = vmatprep.subr.bf16.mxu0 %v749
    %1029 = vmatpush1.bf16.msra.mxu0 %v748
    %1030 = vmatprep.subr.bf16.mxu0 %v757
    %1031 = vmatpush1.bf16.msra.mxu0 %v756
    %1032 = vmatprep.subr.bf16.mxu0 %v765
    %1033 = vmatpush1.bf16.msra.mxu0 %v764
    %1034 = vmatprep.mubr.bf16.mxu0 %v83
    %1035 = vmatmul.mubr.bf16.gmra.mrb[0].mxu0 %v82
    %v1036 = vpop.f32.mrb[0].mxu0
    %v1037 = vadd.f32 %v235, %v1036
    %v1038 = vpop.f32.mrb[0].mxu0
    %v1039 = vadd.f32 %v239, %v1038
    %v1040 = vpop.f32.mrb[0].mxu0
    %v1041 = vadd.f32 %v235, %v1040
    %v1042 = vpop.f32.mrb[0].mxu0
    %v1043 = vadd.f32 %v239, %v1042
    %1044 = vmatprep.mubr.bf16.mxu0 %v85
    %1045 = vmatmul.mubr.bf16.gmra.mrb[0].mxu0 %v84
    %v1046 = vpop.f32.mrb[0].mxu0
    %v1047 = vadd.f32 %v235, %v1046
    %v1048 = vpop.f32.mrb[0].mxu0
    %v1049 = vadd.f32 %v239, %v1048
    %v1050 = vpop.f32.mrb[0].mxu0
    %v1051 = vadd.f32 %v235, %v1050
    %v1052 = vpop.f32.mrb[0].mxu0
    %v1053 = vadd.f32 %v239, %v1052
    %1054 = vdwg.mxu0
    %1055 = vmatprep.subr.bf16.mxu0 %v647
    %1056 = vmatpush1.bf16.msra.mxu0 %v646
    %1057 = vmatprep.subr.bf16.mxu0 %v655
    %1058 = vmatpush1.bf16.msra.mxu0 %v654
    %1059 = vmatprep.subr.bf16.mxu0 %v663
    %1060 = vmatpush1.bf16.msra.mxu0 %v662
    %1061 = vmatprep.subr.bf16.mxu0 %v671
    %1062 = vmatpush1.bf16.msra.mxu0 %v670
    %1063 = vmatprep.subr.bf16.mxu0 %v679
    %1064 = vmatpush1.bf16.msra.mxu0 %v678
    %1065 = vmatprep.subr.bf16.mxu0 %v687
    %1066 = vmatpush1.bf16.msra.mxu0 %v686
    %1067 = vmatprep.subr.bf16.mxu0 %v695
    %1068 = vmatpush1.bf16.msra.mxu0 %v694
    %1069 = vmatprep.subr.bf16.mxu0 %v703
    %1070 = vmatpush1.bf16.msra.mxu0 %v702
    %1071 = vmatprep.subr.bf16.mxu0 %v711
    %1072 = vmatpush1.bf16.msra.mxu0 %v710
    %1073 = vmatprep.subr.bf16.mxu0 %v719
    %1074 = vmatpush1.bf16.msra.mxu0 %v718
    %1075 = vmatprep.subr.bf16.mxu0 %v727
    %1076 = vmatpush1.bf16.msra.mxu0 %v726
    %1077 = vmatprep.subr.bf16.mxu0 %v735
    %1078 = vmatpush1.bf16.msra.mxu0 %v734
    %1079 = vmatprep.subr.bf16.mxu0 %v743
    %1080 = vmatpush1.bf16.msra.mxu0 %v742
    %1081 = vmatprep.subr.bf16.mxu0 %v751
    %1082 = vmatpush1.bf16.msra.mxu0 %v750
    %1083 = vmatprep.subr.bf16.mxu0 %v759
    %1084 = vmatpush1.bf16.msra.mxu0 %v758
    %1085 = vmatprep.subr.bf16.mxu0 %v767
    %1086 = vmatpush1.bf16.msra.mxu0 %v766
    %1087 = vmatprep.mubr.bf16.mxu0 %v83
    %1088 = vmatmul.mubr.bf16.gmra.mrb[0].mxu0 %v82
    %v1089 = vpop.f32.mrb[0].mxu0
    %v1090 = vadd.f32 %v243, %v1089
    %v1091 = vpop.f32.mrb[0].mxu0
    %v1092 = vadd.f32 %v247, %v1091
    %v1093 = vpop.f32.mrb[0].mxu0
    %v1094 = vadd.f32 %v243, %v1093
    %v1095 = vpop.f32.mrb[0].mxu0
    %v1096 = vadd.f32 %v247, %v1095
    %1097 = vmatprep.mubr.bf16.mxu0 %v85
    %1098 = vmatmul.mubr.bf16.gmra.mrb[0].mxu0 %v84
    %v1099 = vpop.f32.mrb[0].mxu0
    %v1100 = vadd.f32 %v243, %v1099
    %v1101 = vpop.f32.mrb[0].mxu0
    %v1102 = vadd.f32 %v247, %v1101
    %v1103 = vpop.f32.mrb[0].mxu0
    %v1104 = vadd.f32 %v243, %v1103
    %v1105 = vpop.f32.mrb[0].mxu0
    %v1106 = vadd.f32 %v247, %v1105
    %1107 = vdwg.mxu0
    %v1108 = vmax.f32 %v931, 0.0
    %v1109 = vmax.f32 %v933, 0.0
    %v1110 = vmax.f32 %v984, 0.0
    %v1111 = vmax.f32 %v986, 0.0
    %v1112 = vmax.f32 %v1037, 0.0
    %v1113 = vmax.f32 %v1039, 0.0
    %v1114 = vmax.f32 %v1090, 0.0
    %v1115 = vmax.f32 %v1092, 0.0
    %v1116 = vmax.f32 %v935, 0.0
    %v1117 = vmax.f32 %v937, 0.0
    %v1118 = vmax.f32 %v988, 0.0
    %v1119 = vmax.f32 %v990, 0.0
    %v1120 = vmax.f32 %v1041, 0.0
    %v1121 = vmax.f32 %v1043, 0.0
    %v1122 = vmax.f32 %v1094, 0.0
    %v1123 = vmax.f32 %v1096, 0.0
    %v1124 = vmax.f32 %v941, 0.0
    %v1125 = vmax.f32 %v943, 0.0
    %v1126 = vmax.f32 %v994, 0.0
    %v1127 = vmax.f32 %v996, 0.0
    %v1128 = vmax.f32 %v1047, 0.0
    %v1129 = vmax.f32 %v1049, 0.0
    %v1130 = vmax.f32 %v1100, 0.0
    %v1131 = vmax.f32 %v1102, 0.0
    %v1132 = vmax.f32 %v945, 0.0
    %v1133 = vmax.f32 %v947, 0.0
    %v1134 = vmax.f32 %v998, 0.0
    %v1135 = vmax.f32 %v1000, 0.0
    %v1136 = vmax.f32 %v1051, 0.0
    %v1137 = vmax.f32 %v1053, 0.0
    %v1138 = vmax.f32 %v1104, 0.0
    %v1139 = vmax.f32 %v1106, 0.0
    %v1140 = vpack.c.bf16 %v1116, %v1108
    %v1141 = vpack.c.bf16 %v1117, %v1109
    %v1142 = vpack.c.bf16 %v1118, %v1110
    %v1143 = vpack.c.bf16 %v1119, %v1111
    %v1144 = vpack.c.bf16 %v1120, %v1112
    %v1145 = vpack.c.bf16 %v1121, %v1113
    %v1146 = vpack.c.bf16 %v1122, %v1114
    %v1147 = vpack.c.bf16 %v1123, %v1115
    %v1148 = vpack.c.bf16 %v1132, %v1124
    %v1149 = vpack.c.bf16 %v1133, %v1125
    %v1150 = vpack.c.bf16 %v1134, %v1126
    %v1151 = vpack.c.bf16 %v1135, %v1127
    %v1152 = vpack.c.bf16 %v1136, %v1128
    %v1153 = vpack.c.bf16 %v1137, %v1129
    %v1154 = vpack.c.bf16 %v1138, %v1130
    %v1155 = vpack.c.bf16 %v1139, %v1131
    %v1156 = vld [vmem:[#allocation8] sm:$0xff]
    %v1157 = vld [vmem:[#allocation8 + $0x8] sm:$0xff]
    %v1158 = vld [vmem:[#allocation8 + $0x10] sm:$0xff]
    %v1159 = vld [vmem:[#allocation8 + $0x18] sm:$0xff]
    %v1160 = vld [vmem:[#allocation8 + $0x20] sm:$0xff]
    %v1161 = vld [vmem:[#allocation8 + $0x28] sm:$0xff]
    %v1162 = vld [vmem:[#allocation8 + $0x30] sm:$0xff]
    %v1163 = vld [vmem:[#allocation8 + $0x38] sm:$0xff]
    %v1164 = vld [vmem:[#allocation8 + $0x40] sm:$0xff]
    %v1165 = vld [vmem:[#allocation8 + $0x48] sm:$0xff]
    %v1166 = vld [vmem:[#allocation8 + $0x50] sm:$0xff]
    %v1167 = vld [vmem:[#allocation8 + $0x58] sm:$0xff]
    %v1168 = vld [vmem:[#allocation8 + $0x60] sm:$0xff]
    %v1169 = vld [vmem:[#allocation8 + $0x68] sm:$0xff]
    %v1170 = vld [vmem:[#allocation8 + $0x70] sm:$0xff]
    %v1171 = vld [vmem:[#allocation8 + $0x78] sm:$0xff]
    %v1172 = vld [vmem:[#allocation8 + $0x80] sm:$0xff]
    %v1173 = vld [vmem:[#allocation8 + $0x88] sm:$0xff]
    %v1174 = vld [vmem:[#allocation8 + $0x90] sm:$0xff]
    %v1175 = vld [vmem:[#allocation8 + $0x98] sm:$0xff]
    %v1176 = vld [vmem:[#allocation8 + $0xa0] sm:$0xff]
    %v1177 = vld [vmem:[#allocation8 + $0xa8] sm:$0xff]
    %v1178 = vld [vmem:[#allocation8 + $0xb0] sm:$0xff]
    %v1179 = vld [vmem:[#allocation8 + $0xb8] sm:$0xff]
    %v1180 = vld [vmem:[#allocation8 + $0xc0] sm:$0xff]
    %v1181 = vld [vmem:[#allocation8 + $0xc8] sm:$0xff]
    %v1182 = vld [vmem:[#allocation8 + $0xd0] sm:$0xff]
    %v1183 = vld [vmem:[#allocation8 + $0xd8] sm:$0xff]
    %v1184 = vld [vmem:[#allocation8 + $0xe0] sm:$0xff]
    %v1185 = vld [vmem:[#allocation8 + $0xe8] sm:$0xff]
    %v1186 = vld [vmem:[#allocation8 + $0xf0] sm:$0xff]
    %v1187 = vld [vmem:[#allocation8 + $0xf8] sm:$0xff]
    %v1188 = vld [vmem:[#allocation8 + $0x100] sm:$0xff]
    %v1189 = vld [vmem:[#allocation8 + $0x108] sm:$0xff]
    %v1190 = vld [vmem:[#allocation8 + $0x110] sm:$0xff]
    %v1191 = vld [vmem:[#allocation8 + $0x118] sm:$0xff]
    %v1192 = vld [vmem:[#allocation8 + $0x120] sm:$0xff]
    %v1193 = vld [vmem:[#allocation8 + $0x128] sm:$0xff]
    %v1194 = vld [vmem:[#allocation8 + $0x130] sm:$0xff]
    %v1195 = vld [vmem:[#allocation8 + $0x138] sm:$0xff]
    %v1196 = vld [vmem:[#allocation8 + $0x140] sm:$0xff]
    %v1197 = vld [vmem:[#allocation8 + $0x148] sm:$0xff]
    %v1198 = vld [vmem:[#allocation8 + $0x150] sm:$0xff]
    %v1199 = vld [vmem:[#allocation8 + $0x158] sm:$0xff]
    %v1200 = vld [vmem:[#allocation8 + $0x160] sm:$0xff]
    %v1201 = vld [vmem:[#allocation8 + $0x168] sm:$0xff]
    %v1202 = vld [vmem:[#allocation8 + $0x170] sm:$0xff]
    %v1203 = vld [vmem:[#allocation8 + $0x178] sm:$0xff]
    %v1204 = vld [vmem:[#allocation8 + $0x180] sm:$0xff]
    %v1205 = vld [vmem:[#allocation8 + $0x188] sm:$0xff]
    %v1206 = vld [vmem:[#allocation8 + $0x190] sm:$0xff]
    %v1207 = vld [vmem:[#allocation8 + $0x198] sm:$0xff]
    %v1208 = vld [vmem:[#allocation8 + $0x1a0] sm:$0xff]
    %v1209 = vld [vmem:[#allocation8 + $0x1a8] sm:$0xff]
    %v1210 = vld [vmem:[#allocation8 + $0x1b0] sm:$0xff]
    %v1211 = vld [vmem:[#allocation8 + $0x1b8] sm:$0xff]
    %v1212 = vld [vmem:[#allocation8 + $0x1c0] sm:$0xff]
    %v1213 = vld [vmem:[#allocation8 + $0x1c8] sm:$0xff]
    %v1214 = vld [vmem:[#allocation8 + $0x1d0] sm:$0xff]
    %v1215 = vld [vmem:[#allocation8 + $0x1d8] sm:$0xff]
    %v1216 = vld [vmem:[#allocation8 + $0x1e0] sm:$0xff]
    %v1217 = vld [vmem:[#allocation8 + $0x1e8] sm:$0xff]
    %v1218 = vld [vmem:[#allocation8 + $0x1f0] sm:$0xff]
    %v1219 = vld [vmem:[#allocation8 + $0x1f8] sm:$0xff]
    %v1220 = vld [vmem:[#allocation8 + $0x200] sm:$0xff]
    %v1221 = vld [vmem:[#allocation8 + $0x208] sm:$0xff]
    %v1222 = vld [vmem:[#allocation8 + $0x210] sm:$0xff]
    %v1223 = vld [vmem:[#allocation8 + $0x218] sm:$0xff]
    %v1224 = vld [vmem:[#allocation8 + $0x220] sm:$0xff]
    %v1225 = vld [vmem:[#allocation8 + $0x228] sm:$0xff]
    %v1226 = vld [vmem:[#allocation8 + $0x230] sm:$0xff]
    %v1227 = vld [vmem:[#allocation8 + $0x238] sm:$0xff]
    %v1228 = vld [vmem:[#allocation8 + $0x240] sm:$0xff]
    %v1229 = vld [vmem:[#allocation8 + $0x248] sm:$0xff]
    %v1230 = vld [vmem:[#allocation8 + $0x250] sm:$0xff]
    %v1231 = vld [vmem:[#allocation8 + $0x258] sm:$0xff]
    %v1232 = vld [vmem:[#allocation8 + $0x260] sm:$0xff]
    %v1233 = vld [vmem:[#allocation8 + $0x268] sm:$0xff]
    %v1234 = vld [vmem:[#allocation8 + $0x270] sm:$0xff]
    %v1235 = vld [vmem:[#allocation8 + $0x278] sm:$0xff]
    %v1236 = vld [vmem:[#allocation8 + $0x280] sm:$0xff]
    %v1237 = vld [vmem:[#allocation8 + $0x288] sm:$0xff]
    %v1238 = vld [vmem:[#allocation8 + $0x290] sm:$0xff]
    %v1239 = vld [vmem:[#allocation8 + $0x298] sm:$0xff]
    %v1240 = vld [vmem:[#allocation8 + $0x2a0] sm:$0xff]
    %v1241 = vld [vmem:[#allocation8 + $0x2a8] sm:$0xff]
    %v1242 = vld [vmem:[#allocation8 + $0x2b0] sm:$0xff]
    %v1243 = vld [vmem:[#allocation8 + $0x2b8] sm:$0xff]
    %v1244 = vld [vmem:[#allocation8 + $0x2c0] sm:$0xff]
    %v1245 = vld [vmem:[#allocation8 + $0x2c8] sm:$0xff]
    %v1246 = vld [vmem:[#allocation8 + $0x2d0] sm:$0xff]
    %v1247 = vld [vmem:[#allocation8 + $0x2d8] sm:$0xff]
    %v1248 = vld [vmem:[#allocation8 + $0x2e0] sm:$0xff]
    %v1249 = vld [vmem:[#allocation8 + $0x2e8] sm:$0xff]
    %v1250 = vld [vmem:[#allocation8 + $0x2f0] sm:$0xff]
    %v1251 = vld [vmem:[#allocation8 + $0x2f8] sm:$0xff]
    %v1252 = vld [vmem:[#allocation8 + $0x300] sm:$0xff]
    %v1253 = vld [vmem:[#allocation8 + $0x308] sm:$0xff]
    %v1254 = vld [vmem:[#allocation8 + $0x310] sm:$0xff]
    %v1255 = vld [vmem:[#allocation8 + $0x318] sm:$0xff]
    %v1256 = vld [vmem:[#allocation8 + $0x320] sm:$0xff]
    %v1257 = vld [vmem:[#allocation8 + $0x328] sm:$0xff]
    %v1258 = vld [vmem:[#allocation8 + $0x330] sm:$0xff]
    %v1259 = vld [vmem:[#allocation8 + $0x338] sm:$0xff]
    %v1260 = vld [vmem:[#allocation8 + $0x340] sm:$0xff]
    %v1261 = vld [vmem:[#allocation8 + $0x348] sm:$0xff]
    %v1262 = vld [vmem:[#allocation8 + $0x350] sm:$0xff]
    %v1263 = vld [vmem:[#allocation8 + $0x358] sm:$0xff]
    %v1264 = vld [vmem:[#allocation8 + $0x360] sm:$0xff]
    %v1265 = vld [vmem:[#allocation8 + $0x368] sm:$0xff]
    %v1266 = vld [vmem:[#allocation8 + $0x370] sm:$0xff]
    %v1267 = vld [vmem:[#allocation8 + $0x378] sm:$0xff]
    %v1268 = vld [vmem:[#allocation8 + $0x380] sm:$0xff]
    %v1269 = vld [vmem:[#allocation8 + $0x388] sm:$0xff]
    %v1270 = vld [vmem:[#allocation8 + $0x390] sm:$0xff]
    %v1271 = vld [vmem:[#allocation8 + $0x398] sm:$0xff]
    %v1272 = vld [vmem:[#allocation8 + $0x3a0] sm:$0xff]
    %v1273 = vld [vmem:[#allocation8 + $0x3a8] sm:$0xff]
    %v1274 = vld [vmem:[#allocation8 + $0x3b0] sm:$0xff]
    %v1275 = vld [vmem:[#allocation8 + $0x3b8] sm:$0xff]
    %v1276 = vld [vmem:[#allocation8 + $0x3c0] sm:$0xff]
    %v1277 = vld [vmem:[#allocation8 + $0x3c8] sm:$0xff]
    %v1278 = vld [vmem:[#allocation8 + $0x3d0] sm:$0xff]
    %v1279 = vld [vmem:[#allocation8 + $0x3d8] sm:$0xff]
    %v1280 = vld [vmem:[#allocation8 + $0x3e0] sm:$0xff]
    %v1281 = vld [vmem:[#allocation8 + $0x3e8] sm:$0xff]
    %v1282 = vld [vmem:[#allocation8 + $0x3f0] sm:$0xff]
    %v1283 = vld [vmem:[#allocation8 + $0x3f8] sm:$0xff]
    %v1284 = vld [vmem:[%s4] sm:$0x3]
    %v1286 = vlaneseq
    %v1287 = vshrl.u32 %v1286, 7
    %v1288 = vsub.s32 0, %v1287
    %v1289 = vrot.slane %v1284, %v1288
    %v1290 = vlaneseq
    %v1291 = vshrl.u32 %v1290, 7
    %v1292 = vsub.s32 1, %v1291
    %v1293 = vrot.slane %v1284, %v1292
    %v1424 = vunpack.c.l.b16 %v1156
    %v1425 = vunpack.c.h.b16 %v1156
    %v1426 = vunpack.c.l.b16 %v1157
    %v1427 = vunpack.c.h.b16 %v1157
    %v1428 = vunpack.c.l.b16 %v1158
    %v1429 = vunpack.c.h.b16 %v1158
    %v1430 = vunpack.c.l.b16 %v1159
    %v1431 = vunpack.c.h.b16 %v1159
    %v1432 = vunpack.c.l.b16 %v1160
    %v1433 = vunpack.c.h.b16 %v1160
    %v1434 = vunpack.c.l.b16 %v1161
    %v1435 = vunpack.c.h.b16 %v1161
    %v1436 = vunpack.c.l.b16 %v1162
    %v1437 = vunpack.c.h.b16 %v1162
    %v1438 = vunpack.c.l.b16 %v1163
    %v1439 = vunpack.c.h.b16 %v1163
    %v1440 = vunpack.c.l.b16 %v1164
    %v1441 = vunpack.c.h.b16 %v1164
    %v1442 = vunpack.c.l.b16 %v1165
    %v1443 = vunpack.c.h.b16 %v1165
    %v1444 = vunpack.c.l.b16 %v1166
    %v1445 = vunpack.c.h.b16 %v1166
    %v1446 = vunpack.c.l.b16 %v1167
    %v1447 = vunpack.c.h.b16 %v1167
    %v1448 = vunpack.c.l.b16 %v1168
    %v1449 = vunpack.c.h.b16 %v1168
    %v1450 = vunpack.c.l.b16 %v1169
    %v1451 = vunpack.c.h.b16 %v1169
    %v1452 = vunpack.c.l.b16 %v1170
    %v1453 = vunpack.c.h.b16 %v1170
    %v1454 = vunpack.c.l.b16 %v1171
    %v1455 = vunpack.c.h.b16 %v1171
    %v1456 = vunpack.c.l.b16 %v1172
    %v1457 = vunpack.c.h.b16 %v1172
    %v1458 = vunpack.c.l.b16 %v1173
    %v1459 = vunpack.c.h.b16 %v1173
    %v1460 = vunpack.c.l.b16 %v1174
    %v1461 = vunpack.c.h.b16 %v1174
    %v1462 = vunpack.c.l.b16 %v1175
    %v1463 = vunpack.c.h.b16 %v1175
    %v1464 = vunpack.c.l.b16 %v1176
    %v1465 = vunpack.c.h.b16 %v1176
    %v1466 = vunpack.c.l.b16 %v1177
    %v1467 = vunpack.c.h.b16 %v1177
    %v1468 = vunpack.c.l.b16 %v1178
    %v1469 = vunpack.c.h.b16 %v1178
    %v1470 = vunpack.c.l.b16 %v1179
    %v1471 = vunpack.c.h.b16 %v1179
    %v1472 = vunpack.c.l.b16 %v1180
    %v1473 = vunpack.c.h.b16 %v1180
    %v1474 = vunpack.c.l.b16 %v1181
    %v1475 = vunpack.c.h.b16 %v1181
    %v1476 = vunpack.c.l.b16 %v1182
    %v1477 = vunpack.c.h.b16 %v1182
    %v1478 = vunpack.c.l.b16 %v1183
    %v1479 = vunpack.c.h.b16 %v1183
    %v1480 = vunpack.c.l.b16 %v1184
    %v1481 = vunpack.c.h.b16 %v1184
    %v1482 = vunpack.c.l.b16 %v1185
    %v1483 = vunpack.c.h.b16 %v1185
    %v1484 = vunpack.c.l.b16 %v1186
    %v1485 = vunpack.c.h.b16 %v1186
    %v1486 = vunpack.c.l.b16 %v1187
    %v1487 = vunpack.c.h.b16 %v1187
    %v1488 = vunpack.c.l.b16 %v1188
    %v1489 = vunpack.c.h.b16 %v1188
    %v1490 = vunpack.c.l.b16 %v1189
    %v1491 = vunpack.c.h.b16 %v1189
    %v1492 = vunpack.c.l.b16 %v1190
    %v1493 = vunpack.c.h.b16 %v1190
    %v1494 = vunpack.c.l.b16 %v1191
    %v1495 = vunpack.c.h.b16 %v1191
    %v1496 = vunpack.c.l.b16 %v1192
    %v1497 = vunpack.c.h.b16 %v1192
    %v1498 = vunpack.c.l.b16 %v1193
    %v1499 = vunpack.c.h.b16 %v1193
    %v1500 = vunpack.c.l.b16 %v1194
    %v1501 = vunpack.c.h.b16 %v1194
    %v1502 = vunpack.c.l.b16 %v1195
    %v1503 = vunpack.c.h.b16 %v1195
    %v1504 = vunpack.c.l.b16 %v1196
    %v1505 = vunpack.c.h.b16 %v1196
    %v1506 = vunpack.c.l.b16 %v1197
    %v1507 = vunpack.c.h.b16 %v1197
    %v1508 = vunpack.c.l.b16 %v1198
    %v1509 = vunpack.c.h.b16 %v1198
    %v1510 = vunpack.c.l.b16 %v1199
    %v1511 = vunpack.c.h.b16 %v1199
    %v1512 = vunpack.c.l.b16 %v1200
    %v1513 = vunpack.c.h.b16 %v1200
    %v1514 = vunpack.c.l.b16 %v1201
    %v1515 = vunpack.c.h.b16 %v1201
    %v1516 = vunpack.c.l.b16 %v1202
    %v1517 = vunpack.c.h.b16 %v1202
    %v1518 = vunpack.c.l.b16 %v1203
    %v1519 = vunpack.c.h.b16 %v1203
    %v1520 = vunpack.c.l.b16 %v1204
    %v1521 = vunpack.c.h.b16 %v1204
    %v1522 = vunpack.c.l.b16 %v1205
    %v1523 = vunpack.c.h.b16 %v1205
    %v1524 = vunpack.c.l.b16 %v1206
    %v1525 = vunpack.c.h.b16 %v1206
    %v1526 = vunpack.c.l.b16 %v1207
    %v1527 = vunpack.c.h.b16 %v1207
    %v1528 = vunpack.c.l.b16 %v1208
    %v1529 = vunpack.c.h.b16 %v1208
    %v1530 = vunpack.c.l.b16 %v1209
    %v1531 = vunpack.c.h.b16 %v1209
    %v1532 = vunpack.c.l.b16 %v1210
    %v1533 = vunpack.c.h.b16 %v1210
    %v1534 = vunpack.c.l.b16 %v1211
    %v1535 = vunpack.c.h.b16 %v1211
    %v1536 = vunpack.c.l.b16 %v1212
    %v1537 = vunpack.c.h.b16 %v1212
    %v1538 = vunpack.c.l.b16 %v1213
    %v1539 = vunpack.c.h.b16 %v1213
    %v1540 = vunpack.c.l.b16 %v1214
    %v1541 = vunpack.c.h.b16 %v1214
    %v1542 = vunpack.c.l.b16 %v1215
    %v1543 = vunpack.c.h.b16 %v1215
    %v1544 = vunpack.c.l.b16 %v1216
    %v1545 = vunpack.c.h.b16 %v1216
    %v1546 = vunpack.c.l.b16 %v1217
    %v1547 = vunpack.c.h.b16 %v1217
    %v1548 = vunpack.c.l.b16 %v1218
    %v1549 = vunpack.c.h.b16 %v1218
    %v1550 = vunpack.c.l.b16 %v1219
    %v1551 = vunpack.c.h.b16 %v1219
    %v1552 = vunpack.c.l.b16 %v1220
    %v1553 = vunpack.c.h.b16 %v1220
    %v1554 = vunpack.c.l.b16 %v1221
    %v1555 = vunpack.c.h.b16 %v1221
    %v1556 = vunpack.c.l.b16 %v1222
    %v1557 = vunpack.c.h.b16 %v1222
    %v1558 = vunpack.c.l.b16 %v1223
    %v1559 = vunpack.c.h.b16 %v1223
    %v1560 = vunpack.c.l.b16 %v1224
    %v1561 = vunpack.c.h.b16 %v1224
    %v1562 = vunpack.c.l.b16 %v1225
    %v1563 = vunpack.c.h.b16 %v1225
    %v1564 = vunpack.c.l.b16 %v1226
    %v1565 = vunpack.c.h.b16 %v1226
    %v1566 = vunpack.c.l.b16 %v1227
    %v1567 = vunpack.c.h.b16 %v1227
    %v1568 = vunpack.c.l.b16 %v1228
    %v1569 = vunpack.c.h.b16 %v1228
    %v1570 = vunpack.c.l.b16 %v1229
    %v1571 = vunpack.c.h.b16 %v1229
    %v1572 = vunpack.c.l.b16 %v1230
    %v1573 = vunpack.c.h.b16 %v1230
    %v1574 = vunpack.c.l.b16 %v1231
    %v1575 = vunpack.c.h.b16 %v1231
    %v1576 = vunpack.c.l.b16 %v1232
    %v1577 = vunpack.c.h.b16 %v1232
    %v1578 = vunpack.c.l.b16 %v1233
    %v1579 = vunpack.c.h.b16 %v1233
    %v1580 = vunpack.c.l.b16 %v1234
    %v1581 = vunpack.c.h.b16 %v1234
    %v1582 = vunpack.c.l.b16 %v1235
    %v1583 = vunpack.c.h.b16 %v1235
    %v1584 = vunpack.c.l.b16 %v1236
    %v1585 = vunpack.c.h.b16 %v1236
    %v1586 = vunpack.c.l.b16 %v1237
    %v1587 = vunpack.c.h.b16 %v1237
    %v1588 = vunpack.c.l.b16 %v1238
    %v1589 = vunpack.c.h.b16 %v1238
    %v1590 = vunpack.c.l.b16 %v1239
    %v1591 = vunpack.c.h.b16 %v1239
    %v1592 = vunpack.c.l.b16 %v1240
    %v1593 = vunpack.c.h.b16 %v1240
    %v1594 = vunpack.c.l.b16 %v1241
    %v1595 = vunpack.c.h.b16 %v1241
    %v1596 = vunpack.c.l.b16 %v1242
    %v1597 = vunpack.c.h.b16 %v1242
    %v1598 = vunpack.c.l.b16 %v1243
    %v1599 = vunpack.c.h.b16 %v1243
    %v1600 = vunpack.c.l.b16 %v1244
    %v1601 = vunpack.c.h.b16 %v1244
    %v1602 = vunpack.c.l.b16 %v1245
    %v1603 = vunpack.c.h.b16 %v1245
    %v1604 = vunpack.c.l.b16 %v1246
    %v1605 = vunpack.c.h.b16 %v1246
    %v1606 = vunpack.c.l.b16 %v1247
    %v1607 = vunpack.c.h.b16 %v1247
    %v1608 = vunpack.c.l.b16 %v1248
    %v1609 = vunpack.c.h.b16 %v1248
    %v1610 = vunpack.c.l.b16 %v1249
    %v1611 = vunpack.c.h.b16 %v1249
    %v1612 = vunpack.c.l.b16 %v1250
    %v1613 = vunpack.c.h.b16 %v1250
    %v1614 = vunpack.c.l.b16 %v1251
    %v1615 = vunpack.c.h.b16 %v1251
    %v1616 = vunpack.c.l.b16 %v1252
    %v1617 = vunpack.c.h.b16 %v1252
    %v1618 = vunpack.c.l.b16 %v1253
    %v1619 = vunpack.c.h.b16 %v1253
    %v1620 = vunpack.c.l.b16 %v1254
    %v1621 = vunpack.c.h.b16 %v1254
    %v1622 = vunpack.c.l.b16 %v1255
    %v1623 = vunpack.c.h.b16 %v1255
    %v1624 = vunpack.c.l.b16 %v1256
    %v1625 = vunpack.c.h.b16 %v1256
    %v1626 = vunpack.c.l.b16 %v1257
    %v1627 = vunpack.c.h.b16 %v1257
    %v1628 = vunpack.c.l.b16 %v1258
    %v1629 = vunpack.c.h.b16 %v1258
    %v1630 = vunpack.c.l.b16 %v1259
    %v1631 = vunpack.c.h.b16 %v1259
    %v1632 = vunpack.c.l.b16 %v1260
    %v1633 = vunpack.c.h.b16 %v1260
    %v1634 = vunpack.c.l.b16 %v1261
    %v1635 = vunpack.c.h.b16 %v1261
    %v1636 = vunpack.c.l.b16 %v1262
    %v1637 = vunpack.c.h.b16 %v1262
    %v1638 = vunpack.c.l.b16 %v1263
    %v1639 = vunpack.c.h.b16 %v1263
    %v1640 = vunpack.c.l.b16 %v1264
    %v1641 = vunpack.c.h.b16 %v1264
    %v1642 = vunpack.c.l.b16 %v1265
    %v1643 = vunpack.c.h.b16 %v1265
    %v1644 = vunpack.c.l.b16 %v1266
    %v1645 = vunpack.c.h.b16 %v1266
    %v1646 = vunpack.c.l.b16 %v1267
    %v1647 = vunpack.c.h.b16 %v1267
    %v1648 = vunpack.c.l.b16 %v1268
    %v1649 = vunpack.c.h.b16 %v1268
    %v1650 = vunpack.c.l.b16 %v1269
    %v1651 = vunpack.c.h.b16 %v1269
    %v1652 = vunpack.c.l.b16 %v1270
    %v1653 = vunpack.c.h.b16 %v1270
    %v1654 = vunpack.c.l.b16 %v1271
    %v1655 = vunpack.c.h.b16 %v1271
    %v1656 = vunpack.c.l.b16 %v1272
    %v1657 = vunpack.c.h.b16 %v1272
    %v1658 = vunpack.c.l.b16 %v1273
    %v1659 = vunpack.c.h.b16 %v1273
    %v1660 = vunpack.c.l.b16 %v1274
    %v1661 = vunpack.c.h.b16 %v1274
    %v1662 = vunpack.c.l.b16 %v1275
    %v1663 = vunpack.c.h.b16 %v1275
    %v1664 = vunpack.c.l.b16 %v1276
    %v1665 = vunpack.c.h.b16 %v1276
    %v1666 = vunpack.c.l.b16 %v1277
    %v1667 = vunpack.c.h.b16 %v1277
    %v1668 = vunpack.c.l.b16 %v1278
    %v1669 = vunpack.c.h.b16 %v1278
    %v1670 = vunpack.c.l.b16 %v1279
    %v1671 = vunpack.c.h.b16 %v1279
    %v1672 = vunpack.c.l.b16 %v1280
    %v1673 = vunpack.c.h.b16 %v1280
    %v1674 = vunpack.c.l.b16 %v1281
    %v1675 = vunpack.c.h.b16 %v1281
    %v1676 = vunpack.c.l.b16 %v1282
    %v1677 = vunpack.c.h.b16 %v1282
    %v1678 = vunpack.c.l.b16 %v1283
    %v1679 = vunpack.c.h.b16 %v1283
    %v1680 = vpack.c.b16 %v1426, %v1424
    %v1681 = vpack.c.b16 %v1427, %v1425
    %v1682 = vpack.c.b16 %v1430, %v1428
    %v1683 = vpack.c.b16 %v1431, %v1429
    %v1684 = vpack.c.b16 %v1434, %v1432
    %v1685 = vpack.c.b16 %v1435, %v1433
    %v1686 = vpack.c.b16 %v1438, %v1436
    %v1687 = vpack.c.b16 %v1439, %v1437
    %v1688 = vpack.c.b16 %v1442, %v1440
    %v1689 = vpack.c.b16 %v1443, %v1441
    %v1690 = vpack.c.b16 %v1446, %v1444
    %v1691 = vpack.c.b16 %v1447, %v1445
    %v1692 = vpack.c.b16 %v1450, %v1448
    %v1693 = vpack.c.b16 %v1451, %v1449
    %v1694 = vpack.c.b16 %v1454, %v1452
    %v1695 = vpack.c.b16 %v1455, %v1453
    %v1696 = vpack.c.b16 %v1458, %v1456
    %v1697 = vpack.c.b16 %v1459, %v1457
    %v1698 = vpack.c.b16 %v1462, %v1460
    %v1699 = vpack.c.b16 %v1463, %v1461
    %v1700 = vpack.c.b16 %v1466, %v1464
    %v1701 = vpack.c.b16 %v1467, %v1465
    %v1702 = vpack.c.b16 %v1470, %v1468
    %v1703 = vpack.c.b16 %v1471, %v1469
    %v1704 = vpack.c.b16 %v1474, %v1472
    %v1705 = vpack.c.b16 %v1475, %v1473
    %v1706 = vpack.c.b16 %v1478, %v1476
    %v1707 = vpack.c.b16 %v1479, %v1477
    %v1708 = vpack.c.b16 %v1482, %v1480
    %v1709 = vpack.c.b16 %v1483, %v1481
    %v1710 = vpack.c.b16 %v1486, %v1484
    %v1711 = vpack.c.b16 %v1487, %v1485
    %v1712 = vpack.c.b16 %v1490, %v1488
    %v1713 = vpack.c.b16 %v1491, %v1489
    %v1714 = vpack.c.b16 %v1494, %v1492
    %v1715 = vpack.c.b16 %v1495, %v1493
    %v1716 = vpack.c.b16 %v1498, %v1496
    %v1717 = vpack.c.b16 %v1499, %v1497
    %v1718 = vpack.c.b16 %v1502, %v1500
    %v1719 = vpack.c.b16 %v1503, %v1501
    %v1720 = vpack.c.b16 %v1506, %v1504
    %v1721 = vpack.c.b16 %v1507, %v1505
    %v1722 = vpack.c.b16 %v1510, %v1508
    %v1723 = vpack.c.b16 %v1511, %v1509
    %v1724 = vpack.c.b16 %v1514, %v1512
    %v1725 = vpack.c.b16 %v1515, %v1513
    %v1726 = vpack.c.b16 %v1518, %v1516
    %v1727 = vpack.c.b16 %v1519, %v1517
    %v1728 = vpack.c.b16 %v1522, %v1520
    %v1729 = vpack.c.b16 %v1523, %v1521
    %v1730 = vpack.c.b16 %v1526, %v1524
    %v1731 = vpack.c.b16 %v1527, %v1525
    %v1732 = vpack.c.b16 %v1530, %v1528
    %v1733 = vpack.c.b16 %v1531, %v1529
    %v1734 = vpack.c.b16 %v1534, %v1532
    %v1735 = vpack.c.b16 %v1535, %v1533
    %v1736 = vpack.c.b16 %v1538, %v1536
    %v1737 = vpack.c.b16 %v1539, %v1537
    %v1738 = vpack.c.b16 %v1542, %v1540
    %v1739 = vpack.c.b16 %v1543, %v1541
    %v1740 = vpack.c.b16 %v1546, %v1544
    %v1741 = vpack.c.b16 %v1547, %v1545
    %v1742 = vpack.c.b16 %v1550, %v1548
    %v1743 = vpack.c.b16 %v1551, %v1549
    %v1744 = vpack.c.b16 %v1554, %v1552
    %v1745 = vpack.c.b16 %v1555, %v1553
    %v1746 = vpack.c.b16 %v1558, %v1556
    %v1747 = vpack.c.b16 %v1559, %v1557
    %v1748 = vpack.c.b16 %v1562, %v1560
    %v1749 = vpack.c.b16 %v1563, %v1561
    %v1750 = vpack.c.b16 %v1566, %v1564
    %v1751 = vpack.c.b16 %v1567, %v1565
    %v1752 = vpack.c.b16 %v1570, %v1568
    %v1753 = vpack.c.b16 %v1571, %v1569
    %v1754 = vpack.c.b16 %v1574, %v1572
    %v1755 = vpack.c.b16 %v1575, %v1573
    %v1756 = vpack.c.b16 %v1578, %v1576
    %v1757 = vpack.c.b16 %v1579, %v1577
    %v1758 = vpack.c.b16 %v1582, %v1580
    %v1759 = vpack.c.b16 %v1583, %v1581
    %v1760 = vpack.c.b16 %v1586, %v1584
    %v1761 = vpack.c.b16 %v1587, %v1585
    %v1762 = vpack.c.b16 %v1590, %v1588
    %v1763 = vpack.c.b16 %v1591, %v1589
    %v1764 = vpack.c.b16 %v1594, %v1592
    %v1765 = vpack.c.b16 %v1595, %v1593
    %v1766 = vpack.c.b16 %v1598, %v1596
    %v1767 = vpack.c.b16 %v1599, %v1597
    %v1768 = vpack.c.b16 %v1602, %v1600
    %v1769 = vpack.c.b16 %v1603, %v1601
    %v1770 = vpack.c.b16 %v1606, %v1604
    %v1771 = vpack.c.b16 %v1607, %v1605
    %v1772 = vpack.c.b16 %v1610, %v1608
    %v1773 = vpack.c.b16 %v1611, %v1609
    %v1774 = vpack.c.b16 %v1614, %v1612
    %v1775 = vpack.c.b16 %v1615, %v1613
    %v1776 = vpack.c.b16 %v1618, %v1616
    %v1777 = vpack.c.b16 %v1619, %v1617
    %v1778 = vpack.c.b16 %v1622, %v1620
    %v1779 = vpack.c.b16 %v1623, %v1621
    %v1780 = vpack.c.b16 %v1626, %v1624
    %v1781 = vpack.c.b16 %v1627, %v1625
    %v1782 = vpack.c.b16 %v1630, %v1628
    %v1783 = vpack.c.b16 %v1631, %v1629
    %v1784 = vpack.c.b16 %v1634, %v1632
    %v1785 = vpack.c.b16 %v1635, %v1633
    %v1786 = vpack.c.b16 %v1638, %v1636
    %v1787 = vpack.c.b16 %v1639, %v1637
    %v1788 = vpack.c.b16 %v1642, %v1640
    %v1789 = vpack.c.b16 %v1643, %v1641
    %v1790 = vpack.c.b16 %v1646, %v1644
    %v1791 = vpack.c.b16 %v1647, %v1645
    %v1792 = vpack.c.b16 %v1650, %v1648
    %v1793 = vpack.c.b16 %v1651, %v1649
    %v1794 = vpack.c.b16 %v1654, %v1652
    %v1795 = vpack.c.b16 %v1655, %v1653
    %v1796 = vpack.c.b16 %v1658, %v1656
    %v1797 = vpack.c.b16 %v1659, %v1657
    %v1798 = vpack.c.b16 %v1662, %v1660
    %v1799 = vpack.c.b16 %v1663, %v1661
    %v1800 = vpack.c.b16 %v1666, %v1664
    %v1801 = vpack.c.b16 %v1667, %v1665
    %v1802 = vpack.c.b16 %v1670, %v1668
    %v1803 = vpack.c.b16 %v1671, %v1669
    %v1804 = vpack.c.b16 %v1674, %v1672
    %v1805 = vpack.c.b16 %v1675, %v1673
    %v1806 = vpack.c.b16 %v1678, %v1676
    %v1807 = vpack.c.b16 %v1679, %v1677
    %1936 = vmatprep.subr.bf16.mxu0 %v1681
    %1937 = vmatpush1.bf16.msra.mxu0 %v1680
    %1938 = vmatprep.subr.bf16.mxu0 %v1683
    %1939 = vmatpush1.bf16.msra.mxu0 %v1682
    %1940 = vmatprep.subr.bf16.mxu0 %v1685
    %1941 = vmatpush1.bf16.msra.mxu0 %v1684
    %1942 = vmatprep.subr.bf16.mxu0 %v1687
    %1943 = vmatpush1.bf16.msra.mxu0 %v1686
    %1944 = vmatprep.subr.bf16.mxu0 %v1689
    %1945 = vmatpush1.bf16.msra.mxu0 %v1688
    %1946 = vmatprep.subr.bf16.mxu0 %v1691
    %1947 = vmatpush1.bf16.msra.mxu0 %v1690
    %1948 = vmatprep.subr.bf16.mxu0 %v1693
    %1949 = vmatpush1.bf16.msra.mxu0 %v1692
    %1950 = vmatprep.subr.bf16.mxu0 %v1695
    %1951 = vmatpush1.bf16.msra.mxu0 %v1694
    %1952 = vmatprep.subr.bf16.mxu0 %v1697
    %1953 = vmatpush1.bf16.msra.mxu0 %v1696
    %1954 = vmatprep.subr.bf16.mxu0 %v1699
    %1955 = vmatpush1.bf16.msra.mxu0 %v1698
    %1956 = vmatprep.subr.bf16.mxu0 %v1701
    %1957 = vmatpush1.bf16.msra.mxu0 %v1700
    %1958 = vmatprep.subr.bf16.mxu0 %v1703
    %1959 = vmatpush1.bf16.msra.mxu0 %v1702
    %1960 = vmatprep.subr.bf16.mxu0 %v1705
    %1961 = vmatpush1.bf16.msra.mxu0 %v1704
    %1962 = vmatprep.subr.bf16.mxu0 %v1707
    %1963 = vmatpush1.bf16.msra.mxu0 %v1706
    %1964 = vmatprep.subr.bf16.mxu0 %v1709
    %1965 = vmatpush1.bf16.msra.mxu0 %v1708
    %1966 = vmatprep.subr.bf16.mxu0 %v1711
    %1967 = vmatpush1.bf16.msra.mxu0 %v1710
    %1968 = vmatprep.mubr.bf16.mxu0 %v1141
    %1969 = vmatmul.mubr.bf16.gmra.mrb[0].mxu0 %v1140
    %v1970 = vpop.f32.mrb[0].mxu0
    %v1971 = vadd.f32 %v1289, %v1970
    %v1972 = vpop.f32.mrb[0].mxu0
    %v1973 = vadd.f32 %v1293, %v1972
    %v1974 = vpop.f32.mrb[0].mxu0
    %v1975 = vadd.f32 %v1289, %v1974
    %v1976 = vpop.f32.mrb[0].mxu0
    %v1977 = vadd.f32 %v1293, %v1976
    %1978 = vmatprep.mubr.bf16.mxu0 %v1149
    %1979 = vmatmul.mubr.bf16.gmra.mrb[0].mxu0 %v1148
    %v1980 = vpop.f32.mrb[0].mxu0
    %v1981 = vadd.f32 %v1289, %v1980
    %v1982 = vpop.f32.mrb[0].mxu0
    %v1983 = vadd.f32 %v1293, %v1982
    %v1984 = vpop.f32.mrb[0].mxu0
    %v1985 = vadd.f32 %v1289, %v1984
    %v1986 = vpop.f32.mrb[0].mxu0
    %v1987 = vadd.f32 %v1293, %v1986
    %1988 = vdwg.mxu0
    %1989 = vmatprep.subr.bf16.mxu0 %v1713
    %1990 = vmatpush1.bf16.msra.mxu0 %v1712
    %1991 = vmatprep.subr.bf16.mxu0 %v1715
    %1992 = vmatpush1.bf16.msra.mxu0 %v1714
    %1993 = vmatprep.subr.bf16.mxu0 %v1717
    %1994 = vmatpush1.bf16.msra.mxu0 %v1716
    %1995 = vmatprep.subr.bf16.mxu0 %v1719
    %1996 = vmatpush1.bf16.msra.mxu0 %v1718
    %1997 = vmatprep.subr.bf16.mxu0 %v1721
    %1998 = vmatpush1.bf16.msra.mxu0 %v1720
    %1999 = vmatprep.subr.bf16.mxu0 %v1723
    %2000 = vmatpush1.bf16.msra.mxu0 %v1722
    %2001 = vmatprep.subr.bf16.mxu0 %v1725
    %2002 = vmatpush1.bf16.msra.mxu0 %v1724
    %2003 = vmatprep.subr.bf16.mxu0 %v1727
    %2004 = vmatpush1.bf16.msra.mxu0 %v1726
    %2005 = vmatprep.subr.bf16.mxu0 %v1729
    %2006 = vmatpush1.bf16.msra.mxu0 %v1728
    %2007 = vmatprep.subr.bf16.mxu0 %v1731
    %2008 = vmatpush1.bf16.msra.mxu0 %v1730
    %2009 = vmatprep.subr.bf16.mxu0 %v1733
    %2010 = vmatpush1.bf16.msra.mxu0 %v1732
    %2011 = vmatprep.subr.bf16.mxu0 %v1735
    %2012 = vmatpush1.bf16.msra.mxu0 %v1734
    %2013 = vmatprep.subr.bf16.mxu0 %v1737
    %2014 = vmatpush1.bf16.msra.mxu0 %v1736
    %2015 = vmatprep.subr.bf16.mxu0 %v1739
    %2016 = vmatpush1.bf16.msra.mxu0 %v1738
    %2017 = vmatprep.subr.bf16.mxu0 %v1741
    %2018 = vmatpush1.bf16.msra.mxu0 %v1740
    %2019 = vmatprep.subr.bf16.mxu0 %v1743
    %2020 = vmatpush1.bf16.msra.mxu0 %v1742
    %2021 = vmatprep.mubr.bf16.mxu0 %v1143
    %2022 = vmatmul.mubr.bf16.gmra.mrb[0].mxu0 %v1142
    %v2023 = vpop.f32.mrb[0].mxu0
    %v2024 = vadd.f32 %v1971, %v2023
    %v2025 = vpop.f32.mrb[0].mxu0
    %v2026 = vadd.f32 %v1973, %v2025
    %v2027 = vpop.f32.mrb[0].mxu0
    %v2028 = vadd.f32 %v1975, %v2027
    %v2029 = vpop.f32.mrb[0].mxu0
    %v2030 = vadd.f32 %v1977, %v2029
    %2031 = vmatprep.mubr.bf16.mxu0 %v1151
    %2032 = vmatmul.mubr.bf16.gmra.mrb[0].mxu0 %v1150
    %v2033 = vpop.f32.mrb[0].mxu0
    %v2034 = vadd.f32 %v1981, %v2033
    %v2035 = vpop.f32.mrb[0].mxu0
    %v2036 = vadd.f32 %v1983, %v2035
    %v2037 = vpop.f32.mrb[0].mxu0
    %v2038 = vadd.f32 %v1985, %v2037
    %v2039 = vpop.f32.mrb[0].mxu0
    %v2040 = vadd.f32 %v1987, %v2039
    %2041 = vdwg.mxu0
    %2042 = vmatprep.subr.bf16.mxu0 %v1745
    %2043 = vmatpush1.bf16.msra.mxu0 %v1744
    %2044 = vmatprep.subr.bf16.mxu0 %v1747
    %2045 = vmatpush1.bf16.msra.mxu0 %v1746
    %2046 = vmatprep.subr.bf16.mxu0 %v1749
    %2047 = vmatpush1.bf16.msra.mxu0 %v1748
    %2048 = vmatprep.subr.bf16.mxu0 %v1751
    %2049 = vmatpush1.bf16.msra.mxu0 %v1750
    %2050 = vmatprep.subr.bf16.mxu0 %v1753
    %2051 = vmatpush1.bf16.msra.mxu0 %v1752
    %2052 = vmatprep.subr.bf16.mxu0 %v1755
    %2053 = vmatpush1.bf16.msra.mxu0 %v1754
    %2054 = vmatprep.subr.bf16.mxu0 %v1757
    %2055 = vmatpush1.bf16.msra.mxu0 %v1756
    %2056 = vmatprep.subr.bf16.mxu0 %v1759
    %2057 = vmatpush1.bf16.msra.mxu0 %v1758
    %2058 = vmatprep.subr.bf16.mxu0 %v1761
    %2059 = vmatpush1.bf16.msra.mxu0 %v1760
    %2060 = vmatprep.subr.bf16.mxu0 %v1763
    %2061 = vmatpush1.bf16.msra.mxu0 %v1762
    %2062 = vmatprep.subr.bf16.mxu0 %v1765
    %2063 = vmatpush1.bf16.msra.mxu0 %v1764
    %2064 = vmatprep.subr.bf16.mxu0 %v1767
    %2065 = vmatpush1.bf16.msra.mxu0 %v1766
    %2066 = vmatprep.subr.bf16.mxu0 %v1769
    %2067 = vmatpush1.bf16.msra.mxu0 %v1768
    %2068 = vmatprep.subr.bf16.mxu0 %v1771
    %2069 = vmatpush1.bf16.msra.mxu0 %v1770
    %2070 = vmatprep.subr.bf16.mxu0 %v1773
    %2071 = vmatpush1.bf16.msra.mxu0 %v1772
    %2072 = vmatprep.subr.bf16.mxu0 %v1775
    %2073 = vmatpush1.bf16.msra.mxu0 %v1774
    %2074 = vmatprep.mubr.bf16.mxu0 %v1145
    %2075 = vmatmul.mubr.bf16.gmra.mrb[0].mxu0 %v1144
    %v2076 = vpop.f32.mrb[0].mxu0
    %v2077 = vadd.f32 %v2024, %v2076
    %v2078 = vpop.f32.mrb[0].mxu0
    %v2079 = vadd.f32 %v2026, %v2078
    %v2080 = vpop.f32.mrb[0].mxu0
    %v2081 = vadd.f32 %v2028, %v2080
    %v2082 = vpop.f32.mrb[0].mxu0
    %v2083 = vadd.f32 %v2030, %v2082
    %2084 = vmatprep.mubr.bf16.mxu0 %v1153
    %2085 = vmatmul.mubr.bf16.gmra.mrb[0].mxu0 %v1152
    %v2086 = vpop.f32.mrb[0].mxu0
    %v2087 = vadd.f32 %v2034, %v2086
    %v2088 = vpop.f32.mrb[0].mxu0
    %v2089 = vadd.f32 %v2036, %v2088
    %v2090 = vpop.f32.mrb[0].mxu0
    %v2091 = vadd.f32 %v2038, %v2090
    %v2092 = vpop.f32.mrb[0].mxu0
    %v2093 = vadd.f32 %v2040, %v2092
    %2094 = vdwg.mxu0
    %2095 = vmatprep.subr.bf16.mxu0 %v1777
    %2096 = vmatpush1.bf16.msra.mxu0 %v1776
    %2097 = vmatprep.subr.bf16.mxu0 %v1779
    %2098 = vmatpush1.bf16.msra.mxu0 %v1778
    %2099 = vmatprep.subr.bf16.mxu0 %v1781
    %2100 = vmatpush1.bf16.msra.mxu0 %v1780
    %2101 = vmatprep.subr.bf16.mxu0 %v1783
    %2102 = vmatpush1.bf16.msra.mxu0 %v1782
    %2103 = vmatprep.subr.bf16.mxu0 %v1785
    %2104 = vmatpush1.bf16.msra.mxu0 %v1784
    %2105 = vmatprep.subr.bf16.mxu0 %v1787
    %2106 = vmatpush1.bf16.msra.mxu0 %v1786
    %2107 = vmatprep.subr.bf16.mxu0 %v1789
    %2108 = vmatpush1.bf16.msra.mxu0 %v1788
    %2109 = vmatprep.subr.bf16.mxu0 %v1791
    %2110 = vmatpush1.bf16.msra.mxu0 %v1790
    %2111 = vmatprep.subr.bf16.mxu0 %v1793
    %2112 = vmatpush1.bf16.msra.mxu0 %v1792
    %2113 = vmatprep.subr.bf16.mxu0 %v1795
    %2114 = vmatpush1.bf16.msra.mxu0 %v1794
    %2115 = vmatprep.subr.bf16.mxu0 %v1797
    %2116 = vmatpush1.bf16.msra.mxu0 %v1796
    %2117 = vmatprep.subr.bf16.mxu0 %v1799
    %2118 = vmatpush1.bf16.msra.mxu0 %v1798
    %2119 = vmatprep.subr.bf16.mxu0 %v1801
    %2120 = vmatpush1.bf16.msra.mxu0 %v1800
    %2121 = vmatprep.subr.bf16.mxu0 %v1803
    %2122 = vmatpush1.bf16.msra.mxu0 %v1802
    %2123 = vmatprep.subr.bf16.mxu0 %v1805
    %2124 = vmatpush1.bf16.msra.mxu0 %v1804
    %2125 = vmatprep.subr.bf16.mxu0 %v1807
    %2126 = vmatpush1.bf16.msra.mxu0 %v1806
    %2127 = vmatprep.mubr.bf16.mxu0 %v1147
    %2128 = vmatmul.mubr.bf16.gmra.mrb[0].mxu0 %v1146
    %v2129 = vpop.f32.mrb[0].mxu0
    %v2130 = vadd.f32 %v2077, %v2129
    %v2131 = vpop.f32.mrb[0].mxu0
    %v2132 = vadd.f32 %v2079, %v2131
    %v2133 = vpop.f32.mrb[0].mxu0
    %v2134 = vadd.f32 %v2081, %v2133
    %v2135 = vpop.f32.mrb[0].mxu0
    %v2136 = vadd.f32 %v2083, %v2135
    %2137 = vmatprep.mubr.bf16.mxu0 %v1155
    %2138 = vmatmul.mubr.bf16.gmra.mrb[0].mxu0 %v1154
    %v2139 = vpop.f32.mrb[0].mxu0
    %v2140 = vadd.f32 %v2087, %v2139
    %v2141 = vpop.f32.mrb[0].mxu0
    %v2142 = vadd.f32 %v2089, %v2141
    %v2143 = vpop.f32.mrb[0].mxu0
    %v2144 = vadd.f32 %v2091, %v2143
    %v2145 = vpop.f32.mrb[0].mxu0
    %v2146 = vadd.f32 %v2093, %v2145
    %2147 = vdwg.mxu0
    %v2148 = vmax.f32 %v2130, 0.0
    %v2149 = vmax.f32 %v2132, 0.0
    %v2150 = vmax.f32 %v2134, 0.0
    %v2151 = vmax.f32 %v2136, 0.0
    %v2152 = vmax.f32 %v2140, 0.0
    %v2153 = vmax.f32 %v2142, 0.0
    %v2154 = vmax.f32 %v2144, 0.0
    %v2155 = vmax.f32 %v2146, 0.0
    %2156 = vst [vmem:[#allocation10] sm:$0xff] %v2148
    %2157 = vst [vmem:[#allocation10 + $0x8] sm:$0xff] %v2149
    %2158 = vst [vmem:[#allocation10 + $0x10] sm:$0xff] %v2150
    %2159 = vst [vmem:[#allocation10 + $0x18] sm:$0xff] %v2151
    %2160 = vst [vmem:[#allocation10 + $0x20] sm:$0xff] %v2152
    %2161 = vst [vmem:[#allocation10 + $0x28] sm:$0xff] %v2153
    %2162 = vst [vmem:[#allocation10 + $0x30] sm:$0xff] %v2154
    %2163 = vst [vmem:[#allocation10 + $0x38] sm:$0xff] %v2155
    // Predicated region
    $region38: #{tpu_custom_call.1} parent=1 // pred_check
      _
    $region39: #{tpu_custom_call.1} parent=1 // pred_check_branch
      %2165 = sbr.rel (0) target = $region41
    $region40: #{tpu_custom_call.1} parent=1 // pred_region
      %s2167 = ssub.s32 1024, 1024
      %2168 = vsyncadd [#allocation4], %s2167
      %s2169 = sshll.u32 [#allocation10], 4
      %s2170 = int_to_ptr.vmem [resolvable:$true] %s2169
      %2175 = dma.vmem_to_hbm [thread:$0]  %s2170, 1024, %s5, [#allocation4], 256, 256, 16
    $region41: #{tpu_custom_call.1} parent=1 // pred_fallthru
      _
    // Predicated region
    $region42: #{tpu_custom_call.1} parent=1 // pred_check
      _
    $region43: #{tpu_custom_call.1} parent=1 // pred_check_branch
      %2177 = sbr.rel (0) target = $region45
    $region44: #{tpu_custom_call.1} parent=1 // pred_region
      %2178 = dma.done [#allocation4], 1024
    $region45: #{tpu_custom_call.1} parent=1 // pred_fallthru
      _
    %2179 = vsyncpa [#allocation3], 1
    %2180 = vsyncpa [#allocation6], 1
    %2181 = vsyncpa [#allocation9], 1
    %2182 = vsyncpa [#allocation4], 1

</llo_original>
